<compile_context>
chip_gen: v7x
topology: tpu7x:2x2x1
jax: 0.10.0
libtpu: 0.0.40
codegen_flags: <defaults>
</compile_context>

<pallas_src>
import math

import jax
import jax.numpy as jnp
from jax import lax
from jax.experimental import pallas as pl
from jax.experimental.pallas import tpu as pltpu

# ---------------- config (small, consistent with the module) ----------------
BATCH = 2
SEQ = 8
HIDDEN = 32
N_HEADS = 4
N_KV_HEADS = 2
HEAD_DIM = HIDDEN // N_HEADS          # 8
N_REP = N_HEADS // N_KV_HEADS         # 2
INTERMEDIATE = 64
EPS = 1e-6
ROPE_THETA = 10000.0

Q_DIM = N_HEADS * HEAD_DIM            # 32
KV_DIM = N_KV_HEADS * HEAD_DIM        # 16
QK_DIM = Q_DIM + KV_DIM               # 48  (packed q-heads | k-heads)
QKV_DIM = Q_DIM + 2 * KV_DIM          # 64
NEG_INF = -1e9


# ------------------------------ fused Pallas kernel --------------------------
def _decoder_layer_kernel(x_ref, cos_ref, sin_ref, rot_ref,
                          ln1_ref, wqkv_ref, wo_ref, ln2_ref,
                          w12_ref, wo_ffn_ref, o_ref):
    """One batch element per grid step; entire decoder layer in VMEM."""
    S = x_ref.shape[0]
    x = x_ref[...].astype(jnp.float32)                       # (S, H)

    # ---- input RMSNorm ----
    var = jnp.mean(x * x, axis=-1, keepdims=True)
    h = x * lax.rsqrt(var + EPS) * ln1_ref[...].astype(jnp.float32)

    # ---- fused QKV projection (single 64-wide matmul) ----
    qkv = jnp.dot(h, wqkv_ref[...].astype(jnp.float32),
                  preferred_element_type=jnp.float32)         # (S, 64)
    qk = qkv[:, :QK_DIM]                                      # (S, 48)
    v = qkv[:, QK_DIM:]                                       # (S, 16)

    # ---- RoPE on packed q|k via block-diagonal rotate_half matrix ----
    # cos/sin are pre-tiled per head; 1/sqrt(head_dim) folded into q columns.
    qk_rot = jnp.dot(qk, rot_ref[...], preferred_element_type=jnp.float32)
    qk = qk * cos_ref[...].astype(jnp.float32) + qk_rot * sin_ref[...].astype(jnp.float32)
    q = qk[:, :Q_DIM]                                         # (S, 32), pre-scaled
    k = qk[:, Q_DIM:]                                         # (S, 16)

    # ---- causal additive mask built in-kernel ----
    row = lax.broadcasted_iota(jnp.int32, (S, S), 0)
    col = lax.broadcasted_iota(jnp.int32, (S, S), 1)
    mask = jnp.where(row >= col, 0.0, NEG_INF).astype(jnp.float32)

    wo = wo_ref[...].astype(jnp.float32)                      # (H, H)
    attn_plus_res = x                                         # o-proj + residual accumulator
    for kvh in range(N_KV_HEADS):                             # GQA: kv head shared by N_REP q heads
        k_h = k[:, kvh * HEAD_DIM:(kvh + 1) * HEAD_DIM]       # (S, hd)
        v_h = v[:, kvh * HEAD_DIM:(kvh + 1) * HEAD_DIM]
        for r in range(N_REP):
            hh = kvh * N_REP + r
            q_h = q[:, hh * HEAD_DIM:(hh + 1) * HEAD_DIM]     # (S, hd)
            scores = lax.dot_general(q_h, k_h, (((1,), (1,)), ((), ())),
                                     preferred_element_type=jnp.float32) + mask
            scores = scores - jnp.max(scores, axis=-1, keepdims=True)
            p = jnp.exp(scores)
            p = p * pl.reciprocal(jnp.sum(p, axis=-1, keepdims=True), approx=True)
            out_h = jnp.dot(p, v_h, preferred_element_type=jnp.float32)   # (S, hd)
            # per-head slice of the o-projection, accumulated (no concat / transpose)
            attn_plus_res = attn_plus_res + jnp.dot(
                out_h, wo[hh * HEAD_DIM:(hh + 1) * HEAD_DIM, :],
                preferred_element_type=jnp.float32)

    # ---- post-attention RMSNorm ----
    h1 = attn_plus_res
    var2 = jnp.mean(h1 * h1, axis=-1, keepdims=True)
    h2 = h1 * lax.rsqrt(var2 + EPS) * ln2_ref[...].astype(jnp.float32)

    # ---- fused SwiGLU FFN (gate|up in a single 128-wide matmul) ----
    g = jnp.dot(h2, w12_ref[...].astype(jnp.float32),
                preferred_element_type=jnp.float32)           # (S, 2*I)
    o1 = g[:, :INTERMEDIATE]
    o2 = g[:, INTERMEDIATE:]
    inter = o1 * (o2 * jax.nn.sigmoid(o2))                    # o1 * silu(o2)
    out = jnp.dot(inter, wo_ffn_ref[...].astype(jnp.float32),
                  preferred_element_type=jnp.float32) + h1
    o_ref[...] = out.astype(o_ref.dtype)


# ------------------------------ host-side helpers -----------------------------
def _rotate_half_matrix(num_blocks, head_dim):
    """Block-diagonal matrix R such that (x @ R) == rotate_half(x) per head block."""
    half = head_dim // 2
    blk = jnp.zeros((head_dim, head_dim), dtype=jnp.float32)
    blk = blk.at[half:, :half].set(-jnp.eye(half, dtype=jnp.float32))
    blk = blk.at[:half, half:].set(jnp.eye(half, dtype=jnp.float32))
    return jnp.kron(jnp.eye(num_blocks, dtype=jnp.float32), blk)


def fuse_params(params):
    """Fold the per-layer weights into the fused layout used by the kernel."""
    return {
        "ln1": params["ln1"].reshape(1, HIDDEN),
        "ln2": params["ln2"].reshape(1, HIDDEN),
        "wqkv": jnp.concatenate([params["wq"], params["wk"], params["wv"]], axis=1),
        "wo": params["wo"],
        "w12": jnp.concatenate([params["w1"], params["w2"]], axis=1),
        "wo_ffn": params["wo_ffn"],
        "rot": _rotate_half_matrix(N_HEADS + N_KV_HEADS, HEAD_DIM),   # (48, 48)
    }


@jax.jit
def pallas_decoder_layer(x, fused, cos, sin):
    B, S, H = x.shape
    scale = 1.0 / math.sqrt(HEAD_DIM)
    # Tile cos/sin per head for the packed [q-heads | k-heads] column layout and
    # fold the attention scale into the q columns.
    cos_qk = jnp.concatenate([jnp.tile(cos * scale, (1, 1, N_HEADS)),
                              jnp.tile(cos, (1, 1, N_KV_HEADS))], axis=-1)   # (B, S, 48)
    sin_qk = jnp.concatenate([jnp.tile(sin * scale, (1, 1, N_HEADS)),
                              jnp.tile(sin, (1, 1, N_KV_HEADS))], axis=-1)   # (B, S, 48)

    def full(shape):
        return pl.BlockSpec(shape, lambda b, _n=len(shape): (0,) * _n)

    return pl.pallas_call(
        _decoder_layer_kernel,
        out_shape=jax.ShapeDtypeStruct((B, S, H), x.dtype),
        grid=(B,),
        in_specs=[
            pl.BlockSpec((None, S, H), lambda b: (b, 0, 0)),        # x
            pl.BlockSpec((None, S, QK_DIM), lambda b: (b, 0, 0)),   # cos (tiled, scaled)
            pl.BlockSpec((None, S, QK_DIM), lambda b: (b, 0, 0)),   # sin (tiled, scaled)
            full((QK_DIM, QK_DIM)),                                 # rotate_half matrix
            full((1, H)),                                           # ln1 weight
            full((H, QKV_DIM)),                                     # fused Wqkv
            full((H, H)),                                           # Wo
            full((1, H)),                                           # ln2 weight
            full((H, 2 * INTERMEDIATE)),                            # fused W1|W2
            full((INTERMEDIATE, H)),                                # FFN Wo
        ],
        out_specs=pl.BlockSpec((None, S, H), lambda b: (b, 0, 0)),
        compiler_params=pltpu.CompilerParams(
            dimension_semantics=("parallel",)),                     # v7x: one batch per TC
    )(x, cos_qk, sin_qk, fused["rot"], fused["ln1"], fused["wqkv"],
      fused["wo"], fused["ln2"], fused["w12"], fused["wo_ffn"])


# -------------------------- pure-JAX reference (check) -------------------------
def reference_decoder_layer(x, p, attn_mask, cos, sin):
    def rms(h, w):
        hf = h.astype(jnp.float32)
        var = jnp.mean(hf * hf, axis=-1, keepdims=True)
        return (w * (hf * lax.rsqrt(var + EPS))).astype(h.dtype)

    def rot(t):
        half = HEAD_DIM // 2
        return jnp.concatenate([-t[..., half:], t[..., :half]], axis=-1)

    B, S, H = x.shape
    residual = x
    h = rms(x, p["ln1"])
    q = (h @ p["wq"]).reshape(B, S, N_HEADS, HEAD_DIM).transpose(0, 2, 1, 3)
    k = (h @ p["wk"]).reshape(B, S, N_KV_HEADS, HEAD_DIM).transpose(0, 2, 1, 3)
    v = (h @ p["wv"]).reshape(B, S, N_KV_HEADS, HEAD_DIM).transpose(0, 2, 1, 3)
    c, s = cos[:, None], sin[:, None]
    q = q * c + rot(q) * s
    k = k * c + rot(k) * s
    k = jnp.repeat(k, N_REP, axis=1)
    v = jnp.repeat(v, N_REP, axis=1)
    scores = jnp.einsum("bhqd,bhkd->bhqk", q, k) / math.sqrt(HEAD_DIM) + attn_mask
    probs = jax.nn.softmax(scores.astype(jnp.float32), axis=-1)
    attn = jnp.einsum("bhqk,bhkd->bhqd", probs, v)
    attn = attn.transpose(0, 2, 1, 3).reshape(B, S, H)
    h = attn @ p["wo"] + residual
    residual = h
    h2 = rms(h, p["ln2"])
    o1, o2 = h2 @ p["w1"], h2 @ p["w2"]
    return residual + (o1 * (o2 * jax.nn.sigmoid(o2))) @ p["wo_ffn"]


# ------------------------------------ main -------------------------------------
if __name__ == "__main__":
    key = jax.random.PRNGKey(0)
    keys = jax.random.split(key, 10)

    def w(k, shape, scale=0.05):
        return (scale * jax.random.normal(k, shape)).astype(jnp.float32)

    params = {
        "ln1": 1.0 + 0.01 * jax.random.normal(keys[0], (HIDDEN,)).astype(jnp.float32),
        "ln2": 1.0 + 0.01 * jax.random.normal(keys[1], (HIDDEN,)).astype(jnp.float32),
        "wq": w(keys[2], (HIDDEN, N_HEADS * HEAD_DIM)),
        "wk": w(keys[3], (HIDDEN, N_KV_HEADS * HEAD_DIM)),
        "wv": w(keys[4], (HIDDEN, N_KV_HEADS * HEAD_DIM)),
        "wo": w(keys[5], (HIDDEN, HIDDEN)),
        "w1": w(keys[6], (HIDDEN, INTERMEDIATE)),
        "w2": w(keys[7], (HIDDEN, INTERMEDIATE)),
        "wo_ffn": w(keys[8], (INTERMEDIATE, HIDDEN)),
    }

    x = jax.random.normal(keys[9], (BATCH, SEQ, HIDDEN), dtype=jnp.float32)

    # rotary embeddings (NDLRotryEmbedding), position_ids = arange per batch
    position_ids = jnp.broadcast_to(
        jnp.arange(SEQ, dtype=jnp.float32)[None, :], (BATCH, SEQ)
    )
    inv_freq = 1.0 / (
        ROPE_THETA ** (jnp.arange(0, HEAD_DIM, 2, dtype=jnp.float32) / HEAD_DIM)
    )
    freqs = position_ids[:, :, None] * inv_freq[None, None, :]       # (B, S, hd/2)
    emb = jnp.concatenate([freqs, freqs], axis=-1)                    # (B, S, hd)
    cos, sin = jnp.cos(emb), jnp.sin(emb)

    # additive causal attention mask (reference only; the kernel builds it via iota)
    causal = jnp.tril(jnp.ones((SEQ, SEQ), dtype=bool))
    attn_mask = jnp.where(causal, 0.0, NEG_INF).astype(jnp.float32)[None, None]
    attn_mask = jnp.broadcast_to(attn_mask, (BATCH, 1, SEQ, SEQ))

    fused = fuse_params(params)
    out = pallas_decoder_layer(x, fused, cos, sin)
    out = jax.block_until_ready(out)

    ref = reference_decoder_layer(x, params, attn_mask, cos, sin)
    assert out.shape == (BATCH, SEQ, HIDDEN)
    assert jnp.allclose(out, ref, atol=3e-3, rtol=3e-3), "mismatch vs reference"

    print("KERNEL_OK")
</pallas_src>

<mosaic_0001>
module attributes {stable_mosaic.version = 11 : i64} {
  func.func @_decoder_layer_kernel(%arg0: i32, %arg1: memref<1x8x32xf32, #tpu.memory_space<vmem>>, %arg2: memref<1x8x48xf32, #tpu.memory_space<vmem>>, %arg3: memref<1x8x48xf32, #tpu.memory_space<vmem>>, %arg4: memref<48x48xf32, #tpu.memory_space<vmem>>, %arg5: memref<1x32xf32, #tpu.memory_space<vmem>>, %arg6: memref<32x64xf32, #tpu.memory_space<vmem>>, %arg7: memref<32x32xf32, #tpu.memory_space<vmem>>, %arg8: memref<1x32xf32, #tpu.memory_space<vmem>>, %arg9: memref<32x128xf32, #tpu.memory_space<vmem>>, %arg10: memref<64x32xf32, #tpu.memory_space<vmem>>, %arg11: memref<1x8x32xf32, #tpu.memory_space<vmem>>) attributes {dimension_semantics = [#tpu.dimension_semantics<parallel>], iteration_bounds = array<i64: 2>, scalar_prefetch = 0 : i64, scratch_operands = 0 : i64, tpu.core_type = #tpu.core_type<tc>, window_params = [{transform_indices = @transform_0, window_bounds = array<i64: 1, 8, 32>}, {transform_indices = @transform_1, window_bounds = array<i64: 1, 8, 48>}, {transform_indices = @transform_2, window_bounds = array<i64: 1, 8, 48>}, {pipeline_mode = #tpu.pipeline_mode<synchronous>, transform_indices = @transform_3, window_bounds = array<i64: 48, 48>}, {pipeline_mode = #tpu.pipeline_mode<synchronous>, transform_indices = @transform_4, window_bounds = array<i64: 1, 32>}, {pipeline_mode = #tpu.pipeline_mode<synchronous>, transform_indices = @transform_5, window_bounds = array<i64: 32, 64>}, {pipeline_mode = #tpu.pipeline_mode<synchronous>, transform_indices = @transform_6, window_bounds = array<i64: 32, 32>}, {pipeline_mode = #tpu.pipeline_mode<synchronous>, transform_indices = @transform_7, window_bounds = array<i64: 1, 32>}, {pipeline_mode = #tpu.pipeline_mode<synchronous>, transform_indices = @transform_8, window_bounds = array<i64: 32, 128>}, {pipeline_mode = #tpu.pipeline_mode<synchronous>, transform_indices = @transform_9, window_bounds = array<i64: 64, 32>}, {transform_indices = @transform_10, window_bounds = array<i64: 1, 8, 32>}]} {
    %c0 = arith.constant 0 : index
    %c0_0 = arith.constant 0 : index
    %c0_1 = arith.constant 0 : index
    %0 = vector.load %arg1[%c0, %c0_0, %c0_1] : memref<1x8x32xf32, #tpu.memory_space<vmem>>, vector<1x8x32xf32>
    %1 = vector.shape_cast %0 : vector<1x8x32xf32> to vector<8x32xf32>
    %2 = arith.mulf %1, %1 : vector<8x32xf32>
    %cst = arith.constant dense<0.000000e+00> : vector<8xf32>
    %3 = vector.multi_reduction <add>, %2, %cst [1] : vector<8x32xf32> to vector<8xf32>
    %4 = vector.shape_cast %3 : vector<8xf32> to vector<8x1xf32>
    %cst_2 = arith.constant 3.200000e+01 : f32
    %5 = vector.broadcast %cst_2 : f32 to vector<8x1xf32>
    %6 = arith.divf %4, %5 : vector<8x1xf32>
    %cst_3 = arith.constant 9.99999997E-7 : f32
    %7 = vector.broadcast %cst_3 : f32 to vector<8x1xf32>
    %8 = arith.addf %6, %7 : vector<8x1xf32>
    %9 = math.rsqrt %8 : vector<8x1xf32>
    %10 = vector.broadcast %9 : vector<8x1xf32> to vector<8x32xf32>
    %11 = arith.mulf %1, %10 : vector<8x32xf32>
    %c0_4 = arith.constant 0 : index
    %c0_5 = arith.constant 0 : index
    %12 = vector.load %arg5[%c0_4, %c0_5] : memref<1x32xf32, #tpu.memory_space<vmem>>, vector<1x32xf32>
    %13 = vector.broadcast %12 : vector<1x32xf32> to vector<8x32xf32>
    %14 = arith.mulf %11, %13 : vector<8x32xf32>
    %c0_6 = arith.constant 0 : index
    %c0_7 = arith.constant 0 : index
    %15 = vector.load %arg6[%c0_6, %c0_7] : memref<32x64xf32, #tpu.memory_space<vmem>>, vector<32x64xf32>
    %cst_8 = arith.constant dense<0.000000e+00> : vector<8x64xf32>
    %16 = tpu.matmul %14, %15, %cst_8 {dimension_numbers = #tpu.dot_dimension_numbers<[1], [0], [0], [1], [0, 0, 1, 1], [], []>} : vector<8x32xf32>, vector<32x64xf32>, vector<8x64xf32> -> vector<8x64xf32>
    %17 = vector.extract_strided_slice %16 {offsets = [0, 0], sizes = [8, 48], strides = [1, 1]} : vector<8x64xf32> to vector<8x48xf32>
    %18 = vector.extract_strided_slice %16 {offsets = [0, 48], sizes = [8, 16], strides = [1, 1]} : vector<8x64xf32> to vector<8x16xf32>
    %c0_9 = arith.constant 0 : index
    %c0_10 = arith.constant 0 : index
    %19 = vector.load %arg4[%c0_9, %c0_10] : memref<48x48xf32, #tpu.memory_space<vmem>>, vector<48x48xf32>
    %cst_11 = arith.constant dense<0.000000e+00> : vector<8x48xf32>
    %20 = tpu.matmul %17, %19, %cst_11 {dimension_numbers = #tpu.dot_dimension_numbers<[1], [0], [0], [1], [0, 0, 1, 1], [], []>} : vector<8x48xf32>, vector<48x48xf32>, vector<8x48xf32> -> vector<8x48xf32>
    %c0_12 = arith.constant 0 : index
    %c0_13 = arith.constant 0 : index
    %c0_14 = arith.constant 0 : index
    %21 = vector.load %arg2[%c0_12, %c0_13, %c0_14] : memref<1x8x48xf32, #tpu.memory_space<vmem>>, vector<1x8x48xf32>
    %22 = vector.shape_cast %21 : vector<1x8x48xf32> to vector<8x48xf32>
    %23 = arith.mulf %17, %22 : vector<8x48xf32>
    %c0_15 = arith.constant 0 : index
    %c0_16 = arith.constant 0 : index
    %c0_17 = arith.constant 0 : index
    %24 = vector.load %arg3[%c0_15, %c0_16, %c0_17] : memref<1x8x48xf32, #tpu.memory_space<vmem>>, vector<1x8x48xf32>
    %25 = vector.shape_cast %24 : vector<1x8x48xf32> to vector<8x48xf32>
    %26 = arith.mulf %20, %25 : vector<8x48xf32>
    %27 = arith.addf %23, %26 : vector<8x48xf32>
    %28 = vector.extract_strided_slice %27 {offsets = [0, 0], sizes = [8, 32], strides = [1, 1]} : vector<8x48xf32> to vector<8x32xf32>
    %29 = vector.extract_strided_slice %27 {offsets = [0, 32], sizes = [8, 16], strides = [1, 1]} : vector<8x48xf32> to vector<8x16xf32>
    %30 = tpu.iota {dimensions = array<i32: 0>} : vector<8x8xi32>
    %31 = tpu.iota {dimensions = array<i32: 1>} : vector<8x8xi32>
    %32 = arith.cmpi sge, %30, %31 : vector<8x8xi32>
    %cst_18 = arith.constant 0.000000e+00 : f32
    %cst_19 = arith.constant -1.000000e+09 : f32
    %33 = vector.broadcast %cst_18 : f32 to vector<8x8xf32>
    %34 = vector.broadcast %cst_19 : f32 to vector<8x8xf32>
    %35 = arith.select %32, %33, %34 : vector<8x8xi1>, vector<8x8xf32>
    %c0_20 = arith.constant 0 : index
    %c0_21 = arith.constant 0 : index
    %36 = vector.load %arg7[%c0_20, %c0_21] : memref<32x32xf32, #tpu.memory_space<vmem>>, vector<32x32xf32>
    %37 = vector.extract_strided_slice %29 {offsets = [0, 0], sizes = [8, 8], strides = [1, 1]} : vector<8x16xf32> to vector<8x8xf32>
    %38 = vector.extract_strided_slice %18 {offsets = [0, 0], sizes = [8, 8], strides = [1, 1]} : vector<8x16xf32> to vector<8x8xf32>
    %39 = vector.extract_strided_slice %28 {offsets = [0, 0], sizes = [8, 8], strides = [1, 1]} : vector<8x32xf32> to vector<8x8xf32>
    %cst_22 = arith.constant dense<0.000000e+00> : vector<8x8xf32>
    %40 = tpu.matmul %39, %37, %cst_22 {dimension_numbers = #tpu.dot_dimension_numbers<[1], [1], [0], [0], [0, 0, 1, 0], [], []>} : vector<8x8xf32>, vector<8x8xf32>, vector<8x8xf32> -> vector<8x8xf32>
    %41 = arith.addf %40, %35 : vector<8x8xf32>
    %cst_23 = arith.constant dense<0xFF800000> : vector<8xf32>
    %42 = vector.multi_reduction <maximumf>, %41, %cst_23 [1] : vector<8x8xf32> to vector<8xf32>
    %43 = vector.shape_cast %42 : vector<8xf32> to vector<8x1xf32>
    %44 = vector.broadcast %43 : vector<8x1xf32> to vector<8x8xf32>
    %45 = arith.subf %41, %44 : vector<8x8xf32>
    %46 = math.exp %45 : vector<8x8xf32>
    %cst_24 = arith.constant dense<0.000000e+00> : vector<8xf32>
    %47 = vector.multi_reduction <add>, %46, %cst_24 [1] : vector<8x8xf32> to vector<8xf32>
    %48 = vector.shape_cast %47 : vector<8xf32> to vector<8x1xf32>
    %49 = tpu.reciprocal %48 {approx = true} : vector<8x1xf32> -> vector<8x1xf32>
    %50 = vector.broadcast %49 : vector<8x1xf32> to vector<8x8xf32>
    %51 = arith.mulf %46, %50 : vector<8x8xf32>
    %cst_25 = arith.constant dense<0.000000e+00> : vector<8x8xf32>
    %52 = tpu.matmul %51, %38, %cst_25 {dimension_numbers = #tpu.dot_dimension_numbers<[1], [0], [0], [1], [0, 0, 1, 1], [], []>} : vector<8x8xf32>, vector<8x8xf32>, vector<8x8xf32> -> vector<8x8xf32>
    %53 = vector.extract_strided_slice %36 {offsets = [0, 0], sizes = [8, 32], strides = [1, 1]} : vector<32x32xf32> to vector<8x32xf32>
    %cst_26 = arith.constant dense<0.000000e+00> : vector<8x32xf32>
    %54 = tpu.matmul %52, %53, %cst_26 {dimension_numbers = #tpu.dot_dimension_numbers<[1], [0], [0], [1], [0, 0, 1, 1], [], []>} : vector<8x8xf32>, vector<8x32xf32>, vector<8x32xf32> -> vector<8x32xf32>
    %55 = arith.addf %1, %54 : vector<8x32xf32>
    %56 = vector.extract_strided_slice %28 {offsets = [0, 8], sizes = [8, 8], strides = [1, 1]} : vector<8x32xf32> to vector<8x8xf32>
    %cst_27 = arith.constant dense<0.000000e+00> : vector<8x8xf32>
    %57 = tpu.matmul %56, %37, %cst_27 {dimension_numbers = #tpu.dot_dimension_numbers<[1], [1], [0], [0], [0, 0, 1, 0], [], []>} : vector<8x8xf32>, vector<8x8xf32>, vector<8x8xf32> -> vector<8x8xf32>
    %58 = arith.addf %57, %35 : vector<8x8xf32>
    %cst_28 = arith.constant dense<0xFF800000> : vector<8xf32>
    %59 = vector.multi_reduction <maximumf>, %58, %cst_28 [1] : vector<8x8xf32> to vector<8xf32>
    %60 = vector.shape_cast %59 : vector<8xf32> to vector<8x1xf32>
    %61 = vector.broadcast %60 : vector<8x1xf32> to vector<8x8xf32>
    %62 = arith.subf %58, %61 : vector<8x8xf32>
    %63 = math.exp %62 : vector<8x8xf32>
    %cst_29 = arith.constant dense<0.000000e+00> : vector<8xf32>
    %64 = vector.multi_reduction <add>, %63, %cst_29 [1] : vector<8x8xf32> to vector<8xf32>
    %65 = vector.shape_cast %64 : vector<8xf32> to vector<8x1xf32>
    %66 = tpu.reciprocal %65 {approx = true} : vector<8x1xf32> -> vector<8x1xf32>
    %67 = vector.broadcast %66 : vector<8x1xf32> to vector<8x8xf32>
    %68 = arith.mulf %63, %67 : vector<8x8xf32>
    %cst_30 = arith.constant dense<0.000000e+00> : vector<8x8xf32>
    %69 = tpu.matmul %68, %38, %cst_30 {dimension_numbers = #tpu.dot_dimension_numbers<[1], [0], [0], [1], [0, 0, 1, 1], [], []>} : vector<8x8xf32>, vector<8x8xf32>, vector<8x8xf32> -> vector<8x8xf32>
    %70 = vector.extract_strided_slice %36 {offsets = [8, 0], sizes = [8, 32], strides = [1, 1]} : vector<32x32xf32> to vector<8x32xf32>
    %cst_31 = arith.constant dense<0.000000e+00> : vector<8x32xf32>
    %71 = tpu.matmul %69, %70, %cst_31 {dimension_numbers = #tpu.dot_dimension_numbers<[1], [0], [0], [1], [0, 0, 1, 1], [], []>} : vector<8x8xf32>, vector<8x32xf32>, vector<8x32xf32> -> vector<8x32xf32>
    %72 = arith.addf %55, %71 : vector<8x32xf32>
    %73 = vector.extract_strided_slice %29 {offsets = [0, 8], sizes = [8, 8], strides = [1, 1]} : vector<8x16xf32> to vector<8x8xf32>
    %74 = vector.extract_strided_slice %18 {offsets = [0, 8], sizes = [8, 8], strides = [1, 1]} : vector<8x16xf32> to vector<8x8xf32>
    %75 = vector.extract_strided_slice %28 {offsets = [0, 16], sizes = [8, 8], strides = [1, 1]} : vector<8x32xf32> to vector<8x8xf32>
    %cst_32 = arith.constant dense<0.000000e+00> : vector<8x8xf32>
    %76 = tpu.matmul %75, %73, %cst_32 {dimension_numbers = #tpu.dot_dimension_numbers<[1], [1], [0], [0], [0, 0, 1, 0], [], []>} : vector<8x8xf32>, vector<8x8xf32>, vector<8x8xf32> -> vector<8x8xf32>
    %77 = arith.addf %76, %35 : vector<8x8xf32>
    %cst_33 = arith.constant dense<0xFF800000> : vector<8xf32>
    %78 = vector.multi_reduction <maximumf>, %77, %cst_33 [1] : vector<8x8xf32> to vector<8xf32>
    %79 = vector.shape_cast %78 : vector<8xf32> to vector<8x1xf32>
    %80 = vector.broadcast %79 : vector<8x1xf32> to vector<8x8xf32>
    %81 = arith.subf %77, %80 : vector<8x8xf32>
    %82 = math.exp %81 : vector<8x8xf32>
    %cst_34 = arith.constant dense<0.000000e+00> : vector<8xf32>
    %83 = vector.multi_reduction <add>, %82, %cst_34 [1] : vector<8x8xf32> to vector<8xf32>
    %84 = vector.shape_cast %83 : vector<8xf32> to vector<8x1xf32>
    %85 = tpu.reciprocal %84 {approx = true} : vector<8x1xf32> -> vector<8x1xf32>
    %86 = vector.broadcast %85 : vector<8x1xf32> to vector<8x8xf32>
    %87 = arith.mulf %82, %86 : vector<8x8xf32>
    %cst_35 = arith.constant dense<0.000000e+00> : vector<8x8xf32>
    %88 = tpu.matmul %87, %74, %cst_35 {dimension_numbers = #tpu.dot_dimension_numbers<[1], [0], [0], [1], [0, 0, 1, 1], [], []>} : vector<8x8xf32>, vector<8x8xf32>, vector<8x8xf32> -> vector<8x8xf32>
    %89 = vector.extract_strided_slice %36 {offsets = [16, 0], sizes = [8, 32], strides = [1, 1]} : vector<32x32xf32> to vector<8x32xf32>
    %cst_36 = arith.constant dense<0.000000e+00> : vector<8x32xf32>
    %90 = tpu.matmul %88, %89, %cst_36 {dimension_numbers = #tpu.dot_dimension_numbers<[1], [0], [0], [1], [0, 0, 1, 1], [], []>} : vector<8x8xf32>, vector<8x32xf32>, vector<8x32xf32> -> vector<8x32xf32>
    %91 = arith.addf %72, %90 : vector<8x32xf32>
    %92 = vector.extract_strided_slice %28 {offsets = [0, 24], sizes = [8, 8], strides = [1, 1]} : vector<8x32xf32> to vector<8x8xf32>
    %cst_37 = arith.constant dense<0.000000e+00> : vector<8x8xf32>
    %93 = tpu.matmul %92, %73, %cst_37 {dimension_numbers = #tpu.dot_dimension_numbers<[1], [1], [0], [0], [0, 0, 1, 0], [], []>} : vector<8x8xf32>, vector<8x8xf32>, vector<8x8xf32> -> vector<8x8xf32>
    %94 = arith.addf %93, %35 : vector<8x8xf32>
    %cst_38 = arith.constant dense<0xFF800000> : vector<8xf32>
    %95 = vector.multi_reduction <maximumf>, %94, %cst_38 [1] : vector<8x8xf32> to vector<8xf32>
    %96 = vector.shape_cast %95 : vector<8xf32> to vector<8x1xf32>
    %97 = vector.broadcast %96 : vector<8x1xf32> to vector<8x8xf32>
    %98 = arith.subf %94, %97 : vector<8x8xf32>
    %99 = math.exp %98 : vector<8x8xf32>
    %cst_39 = arith.constant dense<0.000000e+00> : vector<8xf32>
    %100 = vector.multi_reduction <add>, %99, %cst_39 [1] : vector<8x8xf32> to vector<8xf32>
    %101 = vector.shape_cast %100 : vector<8xf32> to vector<8x1xf32>
    %102 = tpu.reciprocal %101 {approx = true} : vector<8x1xf32> -> vector<8x1xf32>
    %103 = vector.broadcast %102 : vector<8x1xf32> to vector<8x8xf32>
    %104 = arith.mulf %99, %103 : vector<8x8xf32>
    %cst_40 = arith.constant dense<0.000000e+00> : vector<8x8xf32>
    %105 = tpu.matmul %104, %74, %cst_40 {dimension_numbers = #tpu.dot_dimension_numbers<[1], [0], [0], [1], [0, 0, 1, 1], [], []>} : vector<8x8xf32>, vector<8x8xf32>, vector<8x8xf32> -> vector<8x8xf32>
    %106 = vector.extract_strided_slice %36 {offsets = [24, 0], sizes = [8, 32], strides = [1, 1]} : vector<32x32xf32> to vector<8x32xf32>
    %cst_41 = arith.constant dense<0.000000e+00> : vector<8x32xf32>
    %107 = tpu.matmul %105, %106, %cst_41 {dimension_numbers = #tpu.dot_dimension_numbers<[1], [0], [0], [1], [0, 0, 1, 1], [], []>} : vector<8x8xf32>, vector<8x32xf32>, vector<8x32xf32> -> vector<8x32xf32>
    %108 = arith.addf %91, %107 : vector<8x32xf32>
    %109 = arith.mulf %108, %108 : vector<8x32xf32>
    %cst_42 = arith.constant dense<0.000000e+00> : vector<8xf32>
    %110 = vector.multi_reduction <add>, %109, %cst_42 [1] : vector<8x32xf32> to vector<8xf32>
    %111 = vector.shape_cast %110 : vector<8xf32> to vector<8x1xf32>
    %cst_43 = arith.constant 3.200000e+01 : f32
    %112 = vector.broadcast %cst_43 : f32 to vector<8x1xf32>
    %113 = arith.divf %111, %112 : vector<8x1xf32>
    %cst_44 = arith.constant 9.99999997E-7 : f32
    %114 = vector.broadcast %cst_44 : f32 to vector<8x1xf32>
    %115 = arith.addf %113, %114 : vector<8x1xf32>
    %116 = math.rsqrt %115 : vector<8x1xf32>
    %117 = vector.broadcast %116 : vector<8x1xf32> to vector<8x32xf32>
    %118 = arith.mulf %108, %117 : vector<8x32xf32>
    %c0_45 = arith.constant 0 : index
    %c0_46 = arith.constant 0 : index
    %119 = vector.load %arg8[%c0_45, %c0_46] : memref<1x32xf32, #tpu.memory_space<vmem>>, vector<1x32xf32>
    %120 = vector.broadcast %119 : vector<1x32xf32> to vector<8x32xf32>
    %121 = arith.mulf %118, %120 : vector<8x32xf32>
    %c0_47 = arith.constant 0 : index
    %c0_48 = arith.constant 0 : index
    %122 = vector.load %arg9[%c0_47, %c0_48] : memref<32x128xf32, #tpu.memory_space<vmem>>, vector<32x128xf32>
    %cst_49 = arith.constant dense<0.000000e+00> : vector<8x128xf32>
    %123 = tpu.matmul %121, %122, %cst_49 {dimension_numbers = #tpu.dot_dimension_numbers<[1], [0], [0], [1], [0, 0, 1, 1], [], []>} : vector<8x32xf32>, vector<32x128xf32>, vector<8x128xf32> -> vector<8x128xf32>
    %124 = vector.extract_strided_slice %123 {offsets = [0, 0], sizes = [8, 64], strides = [1, 1]} : vector<8x128xf32> to vector<8x64xf32>
    %125 = vector.extract_strided_slice %123 {offsets = [0, 64], sizes = [8, 64], strides = [1, 1]} : vector<8x128xf32> to vector<8x64xf32>
    %126 = arith.negf %125 : vector<8x64xf32>
    %127 = math.exp %126 : vector<8x64xf32>
    %cst_50 = arith.constant 1.000000e+00 : f32
    %128 = vector.broadcast %cst_50 : f32 to vector<8x64xf32>
    %129 = arith.addf %128, %127 : vector<8x64xf32>
    %130 = arith.divf %128, %129 : vector<8x64xf32>
    %131 = arith.mulf %125, %130 : vector<8x64xf32>
    %132 = arith.mulf %124, %131 : vector<8x64xf32>
    %c0_51 = arith.constant 0 : index
    %c0_52 = arith.constant 0 : index
    %133 = vector.load %arg10[%c0_51, %c0_52] : memref<64x32xf32, #tpu.memory_space<vmem>>, vector<64x32xf32>
    %cst_53 = arith.constant dense<0.000000e+00> : vector<8x32xf32>
    %134 = tpu.matmul %132, %133, %cst_53 {dimension_numbers = #tpu.dot_dimension_numbers<[1], [0], [0], [1], [0, 0, 1, 1], [], []>} : vector<8x64xf32>, vector<64x32xf32>, vector<8x32xf32> -> vector<8x32xf32>
    %135 = arith.addf %134, %108 : vector<8x32xf32>
    %c0_54 = arith.constant 0 : index
    %c0_55 = arith.constant 0 : index
    %c0_56 = arith.constant 0 : index
    %136 = vector.load %arg11[%c0_54, %c0_55, %c0_56] : memref<1x8x32xf32, #tpu.memory_space<vmem>>, vector<1x8x32xf32>
    %137 = vector.shape_cast %136 : vector<1x8x32xf32> to vector<8x32xf32>
    %138 = vector.shape_cast %135 : vector<8x32xf32> to vector<1x8x32xf32>
    tpu.vector_store %arg11[%c0_54, %c0_55, %c0_56], %138 {strides = array<i32>} : memref<1x8x32xf32, #tpu.memory_space<vmem>>, vector<1x8x32xf32>,
    return
  }
  func.func @transform_0(%arg0: i32) -> (i32, i32, i32) {
    %c0_i32 = arith.constant 0 : i32
    %c0_i32_0 = arith.constant 0 : i32
    %c0_i32_1 = arith.constant 0 : i32
    return %arg0, %c0_i32, %c0_i32_0 : i32, i32, i32
  }
  func.func @transform_1(%arg0: i32) -> (i32, i32, i32) {
    %c0_i32 = arith.constant 0 : i32
    %c0_i32_0 = arith.constant 0 : i32
    %c0_i32_1 = arith.constant 0 : i32
    return %arg0, %c0_i32, %c0_i32_0 : i32, i32, i32
  }
  func.func @transform_2(%arg0: i32) -> (i32, i32, i32) {
    %c0_i32 = arith.constant 0 : i32
    %c0_i32_0 = arith.constant 0 : i32
    %c0_i32_1 = arith.constant 0 : i32
    return %arg0, %c0_i32, %c0_i32_0 : i32, i32, i32
  }
  func.func @transform_3(%arg0: i32) -> (i32, i32) {
    %c0_i32 = arith.constant 0 : i32
    %c0_i32_0 = arith.constant 0 : i32
    %c0_i32_1 = arith.constant 0 : i32
    return %c0_i32, %c0_i32_0 : i32, i32
  }
  func.func @transform_4(%arg0: i32) -> (i32, i32) {
    %c0_i32 = arith.constant 0 : i32
    %c0_i32_0 = arith.constant 0 : i32
    %c0_i32_1 = arith.constant 0 : i32
    return %c0_i32, %c0_i32_0 : i32, i32
  }
  func.func @transform_5(%arg0: i32) -> (i32, i32) {
    %c0_i32 = arith.constant 0 : i32
    %c0_i32_0 = arith.constant 0 : i32
    %c0_i32_1 = arith.constant 0 : i32
    return %c0_i32, %c0_i32_0 : i32, i32
  }
  func.func @transform_6(%arg0: i32) -> (i32, i32) {
    %c0_i32 = arith.constant 0 : i32
    %c0_i32_0 = arith.constant 0 : i32
    %c0_i32_1 = arith.constant 0 : i32
    return %c0_i32, %c0_i32_0 : i32, i32
  }
  func.func @transform_7(%arg0: i32) -> (i32, i32) {
    %c0_i32 = arith.constant 0 : i32
    %c0_i32_0 = arith.constant 0 : i32
    %c0_i32_1 = arith.constant 0 : i32
    return %c0_i32, %c0_i32_0 : i32, i32
  }
  func.func @transform_8(%arg0: i32) -> (i32, i32) {
    %c0_i32 = arith.constant 0 : i32
    %c0_i32_0 = arith.constant 0 : i32
    %c0_i32_1 = arith.constant 0 : i32
    return %c0_i32, %c0_i32_0 : i32, i32
  }
  func.func @transform_9(%arg0: i32) -> (i32, i32) {
    %c0_i32 = arith.constant 0 : i32
    %c0_i32_0 = arith.constant 0 : i32
    %c0_i32_1 = arith.constant 0 : i32
    return %c0_i32, %c0_i32_0 : i32, i32
  }
  func.func @transform_10(%arg0: i32) -> (i32, i32, i32) {
    %c0_i32 = arith.constant 0 : i32
    %c0_i32_0 = arith.constant 0 : i32
    %c0_i32_1 = arith.constant 0 : i32
    return %arg0, %c0_i32, %c0_i32_0 : i32, i32, i32
  }
}

</mosaic_0001>

<llo_original>
// kernel: tile.24
$region0: #{tile.24}
  %s0 = inlined_call_operand.vmem [shape: f32[2,8,4,8], index: 0, kind: input, shape index: {}]
  %s1 = inlined_call_operand.vmem [shape: f32[2,8,32], index: 1, kind: output, shape index: {}]
  $region1: #{tile.24} parent=0
    #allocation0 [shape = 'u8[65536]{0}', space=vmem, size = 0x10000, scoped, tag = 'scoped mem for input reshape']
    %s3 = sshllo.u32 0, 4
    %s4 = smul.addr 4, 15
    %s5 = scalar_lea.vmem %s0, %s4
    %v6 = vld [vmem:[%s5] sm:%s3]
    %s7 = scalar_lea.vmem [#allocation0], 120
    %8 = vst [vmem:[%s7] sm:%s3] %v6
    %s9 = smul.addr 4, 14
    %s10 = scalar_lea.vmem %s0, %s9
    %v11 = vld [vmem:[%s10] sm:%s3]
    %s12 = scalar_lea.vmem [#allocation0], 112
    %13 = vst [vmem:[%s12] sm:%s3] %v11
    %s14 = smul.addr 4, 13
    %s15 = scalar_lea.vmem %s0, %s14
    %v16 = vld [vmem:[%s15] sm:%s3]
    %s17 = scalar_lea.vmem [#allocation0], 104
    %18 = vst [vmem:[%s17] sm:%s3] %v16
    %s19 = smul.addr 4, 12
    %s20 = scalar_lea.vmem %s0, %s19
    %v21 = vld [vmem:[%s20] sm:%s3]
    %s22 = scalar_lea.vmem [#allocation0], 96
    %23 = vst [vmem:[%s22] sm:%s3] %v21
    %s24 = smul.addr 4, 11
    %s25 = scalar_lea.vmem %s0, %s24
    %v26 = vld [vmem:[%s25] sm:%s3]
    %s27 = scalar_lea.vmem [#allocation0], 88
    %28 = vst [vmem:[%s27] sm:%s3] %v26
    %s29 = smul.addr 4, 10
    %s30 = scalar_lea.vmem %s0, %s29
    %v31 = vld [vmem:[%s30] sm:%s3]
    %s32 = scalar_lea.vmem [#allocation0], 80
    %33 = vst [vmem:[%s32] sm:%s3] %v31
    %s34 = smul.addr 4, 9
    %s35 = scalar_lea.vmem %s0, %s34
    %v36 = vld [vmem:[%s35] sm:%s3]
    %s37 = scalar_lea.vmem [#allocation0], 72
    %38 = vst [vmem:[%s37] sm:%s3] %v36
    %s39 = smul.addr 4, 8
    %s40 = scalar_lea.vmem %s0, %s39
    %v41 = vld [vmem:[%s40] sm:%s3]
    %s42 = scalar_lea.vmem [#allocation0], 64
    %43 = vst [vmem:[%s42] sm:%s3] %v41
    %s44 = smul.addr 4, 7
    %s45 = scalar_lea.vmem %s0, %s44
    %v46 = vld [vmem:[%s45] sm:%s3]
    %s47 = scalar_lea.vmem [#allocation0], 56
    %48 = vst [vmem:[%s47] sm:%s3] %v46
    %s49 = smul.addr 4, 6
    %s50 = scalar_lea.vmem %s0, %s49
    %v51 = vld [vmem:[%s50] sm:%s3]
    %s52 = scalar_lea.vmem [#allocation0], 48
    %53 = vst [vmem:[%s52] sm:%s3] %v51
    %s54 = smul.addr 4, 5
    %s55 = scalar_lea.vmem %s0, %s54
    %v56 = vld [vmem:[%s55] sm:%s3]
    %s57 = scalar_lea.vmem [#allocation0], 40
    %58 = vst [vmem:[%s57] sm:%s3] %v56
    %s59 = smul.addr 4, 4
    %s60 = scalar_lea.vmem %s0, %s59
    %v61 = vld [vmem:[%s60] sm:%s3]
    %s62 = scalar_lea.vmem [#allocation0], 32
    %63 = vst [vmem:[%s62] sm:%s3] %v61
    %s64 = smul.addr 4, 3
    %s65 = scalar_lea.vmem %s0, %s64
    %v66 = vld [vmem:[%s65] sm:%s3]
    %s67 = scalar_lea.vmem [#allocation0], 24
    %68 = vst [vmem:[%s67] sm:%s3] %v66
    %s69 = smul.addr 4, 2
    %s70 = scalar_lea.vmem %s0, %s69
    %v71 = vld [vmem:[%s70] sm:%s3]
    %s72 = scalar_lea.vmem [#allocation0], 16
    %73 = vst [vmem:[%s72] sm:%s3] %v71
    %s74 = scalar_lea.vmem %s0, 4
    %v75 = vld [vmem:[%s74] sm:%s3]
    %s76 = scalar_lea.vmem [#allocation0], 8
    %77 = vst [vmem:[%s76] sm:%s3] %v75
    %v78 = vld [vmem:[%s0] sm:%s3]
    %79 = vst [vmem:[#allocation0] sm:%s3] %v78
    %v80 = vld [vmem:[#allocation0] ss:$8 sm:$0xf]
    %v81 = vld [vmem:[#allocation0] ss:$8 sm:$0xf0]
    %vm82 = vcmask 1047556
    %v83 = vsel %vm82, %v81, %v80
    %vm84 = vcmask 64512
    %85 = vst.msk [vmem:[%s1] sm:$0xff] %vm84, %v83
    %s86 = scalar_lea.vmem [#allocation0], 64
    %v87 = vld [vmem:[%s86] ss:$8 sm:$0xf]
    %s88 = scalar_lea.vmem [#allocation0], 64
    %v89 = vld [vmem:[%s88] ss:$8 sm:$0xf0]
    %vm90 = vcmask 1047556
    %v91 = vsel %vm90, %v89, %v87
    %vm92 = vcmask 64512
    %s93 = scalar_lea.vmem %s1, 8
    %94 = vst.msk [vmem:[%s93] sm:$0xff] %vm92, %v91
    %s95 = scalar_lea.vmem [#allocation0], 3
    %v96 = vld [vmem:[%s95] ss:$8 sm:$0xf]
    %s97 = scalar_lea.vmem [#allocation0], 3
    %v98 = vld [vmem:[%s97] ss:$8 sm:$0xf0]
    %vm99 = vcmask 1047556
    %v100 = vsel %vm99, %v98, %v96
    %101 = vrot.lane.b32.xlu0 %v100, 24
    %v102 = vpop.permute.xlu0 %101
    %vm103 = vcmask 261312
    %104 = vst.msk [vmem:[%s1] sm:$0xff] %vm103, %v102
    %s105 = scalar_lea.vmem [#allocation0], 67
    %v106 = vld [vmem:[%s105] ss:$8 sm:$0xf]
    %s107 = scalar_lea.vmem [#allocation0], 67
    %v108 = vld [vmem:[%s107] ss:$8 sm:$0xf0]
    %vm109 = vcmask 1047556
    %v110 = vsel %vm109, %v108, %v106
    %111 = vrot.lane.b32.xlu0 %v110, 24
    %v112 = vpop.permute.xlu0 %111
    %vm113 = vcmask 261312
    %s114 = scalar_lea.vmem %s1, 8
    %115 = vst.msk [vmem:[%s114] sm:$0xff] %vm113, %v112
    %s116 = scalar_lea.vmem [#allocation0], 2
    %v117 = vld [vmem:[%s116] ss:$8 sm:$0xf]
    %s118 = scalar_lea.vmem [#allocation0], 2
    %v119 = vld [vmem:[%s118] ss:$8 sm:$0xf0]
    %vm120 = vcmask 1047556
    %v121 = vsel %vm120, %v119, %v117
    %122 = vrot.lane.b32.xlu0 %v121, 16
    %v123 = vpop.permute.xlu0 %122
    %vm124 = vcmask 195712
    %125 = vst.msk [vmem:[%s1] sm:$0xff] %vm124, %v123
    %s126 = scalar_lea.vmem [#allocation0], 66
    %v127 = vld [vmem:[%s126] ss:$8 sm:$0xf]
    %s128 = scalar_lea.vmem [#allocation0], 66
    %v129 = vld [vmem:[%s128] ss:$8 sm:$0xf0]
    %vm130 = vcmask 1047556
    %v131 = vsel %vm130, %v129, %v127
    %132 = vrot.lane.b32.xlu0 %v131, 16
    %v133 = vpop.permute.xlu0 %132
    %vm134 = vcmask 195712
    %s135 = scalar_lea.vmem %s1, 8
    %136 = vst.msk [vmem:[%s135] sm:$0xff] %vm134, %v133
    %s137 = scalar_lea.vmem [#allocation0], 1
    %v138 = vld [vmem:[%s137] ss:$8 sm:$0xf]
    %s139 = scalar_lea.vmem [#allocation0], 1
    %v140 = vld [vmem:[%s139] ss:$8 sm:$0xf0]
    %vm141 = vcmask 1047556
    %v142 = vsel %vm141, %v140, %v138
    %143 = vrot.lane.b32.xlu0 %v142, 8
    %v144 = vpop.permute.xlu0 %143
    %vm145 = vcmask 130112
    %146 = vst.msk [vmem:[%s1] sm:$0xff] %vm145, %v144
    %s147 = scalar_lea.vmem [#allocation0], 65
    %v148 = vld [vmem:[%s147] ss:$8 sm:$0xf]
    %s149 = scalar_lea.vmem [#allocation0], 65
    %v150 = vld [vmem:[%s149] ss:$8 sm:$0xf0]
    %vm151 = vcmask 1047556
    %v152 = vsel %vm151, %v150, %v148
    %153 = vrot.lane.b32.xlu0 %v152, 8
    %v154 = vpop.permute.xlu0 %153
    %vm155 = vcmask 130112
    %s156 = scalar_lea.vmem %s1, 8
    %157 = vst.msk [vmem:[%s156] sm:$0xff] %vm155, %v154

// kernel: tile.29
$region0: #{tile.29}
  %s0 = inlined_call_operand.vmem [shape: f32[2,8,2,8], index: 0, kind: input, shape index: {}]
  %s1 = inlined_call_operand.vmem [shape: f32[2,8,16], index: 1, kind: output, shape index: {}]
  $region1: #{tile.29} parent=0
    #allocation0 [shape = 'u8[65536]{0}', space=vmem, size = 0x10000, scoped, tag = 'scoped mem for input reshape']
    %s3 = sshllo.u32 0, 2
    %s4 = smul.addr 2, 15
    %s5 = scalar_lea.vmem %s0, %s4
    %v6 = vld [vmem:[%s5] sm:%s3]
    %s7 = scalar_lea.vmem [#allocation0], 120
    %8 = vst [vmem:[%s7] sm:%s3] %v6
    %s9 = smul.addr 2, 14
    %s10 = scalar_lea.vmem %s0, %s9
    %v11 = vld [vmem:[%s10] sm:%s3]
    %s12 = scalar_lea.vmem [#allocation0], 112
    %13 = vst [vmem:[%s12] sm:%s3] %v11
    %s14 = smul.addr 2, 13
    %s15 = scalar_lea.vmem %s0, %s14
    %v16 = vld [vmem:[%s15] sm:%s3]
    %s17 = scalar_lea.vmem [#allocation0], 104
    %18 = vst [vmem:[%s17] sm:%s3] %v16
    %s19 = smul.addr 2, 12
    %s20 = scalar_lea.vmem %s0, %s19
    %v21 = vld [vmem:[%s20] sm:%s3]
    %s22 = scalar_lea.vmem [#allocation0], 96
    %23 = vst [vmem:[%s22] sm:%s3] %v21
    %s24 = smul.addr 2, 11
    %s25 = scalar_lea.vmem %s0, %s24
    %v26 = vld [vmem:[%s25] sm:%s3]
    %s27 = scalar_lea.vmem [#allocation0], 88
    %28 = vst [vmem:[%s27] sm:%s3] %v26
    %s29 = smul.addr 2, 10
    %s30 = scalar_lea.vmem %s0, %s29
    %v31 = vld [vmem:[%s30] sm:%s3]
    %s32 = scalar_lea.vmem [#allocation0], 80
    %33 = vst [vmem:[%s32] sm:%s3] %v31
    %s34 = smul.addr 2, 9
    %s35 = scalar_lea.vmem %s0, %s34
    %v36 = vld [vmem:[%s35] sm:%s3]
    %s37 = scalar_lea.vmem [#allocation0], 72
    %38 = vst [vmem:[%s37] sm:%s3] %v36
    %s39 = smul.addr 2, 8
    %s40 = scalar_lea.vmem %s0, %s39
    %v41 = vld [vmem:[%s40] sm:%s3]
    %s42 = scalar_lea.vmem [#allocation0], 64
    %43 = vst [vmem:[%s42] sm:%s3] %v41
    %s44 = smul.addr 2, 7
    %s45 = scalar_lea.vmem %s0, %s44
    %v46 = vld [vmem:[%s45] sm:%s3]
    %s47 = scalar_lea.vmem [#allocation0], 56
    %48 = vst [vmem:[%s47] sm:%s3] %v46
    %s49 = smul.addr 2, 6
    %s50 = scalar_lea.vmem %s0, %s49
    %v51 = vld [vmem:[%s50] sm:%s3]
    %s52 = scalar_lea.vmem [#allocation0], 48
    %53 = vst [vmem:[%s52] sm:%s3] %v51
    %s54 = smul.addr 2, 5
    %s55 = scalar_lea.vmem %s0, %s54
    %v56 = vld [vmem:[%s55] sm:%s3]
    %s57 = scalar_lea.vmem [#allocation0], 40
    %58 = vst [vmem:[%s57] sm:%s3] %v56
    %s59 = smul.addr 2, 4
    %s60 = scalar_lea.vmem %s0, %s59
    %v61 = vld [vmem:[%s60] sm:%s3]
    %s62 = scalar_lea.vmem [#allocation0], 32
    %63 = vst [vmem:[%s62] sm:%s3] %v61
    %s64 = smul.addr 2, 3
    %s65 = scalar_lea.vmem %s0, %s64
    %v66 = vld [vmem:[%s65] sm:%s3]
    %s67 = scalar_lea.vmem [#allocation0], 24
    %68 = vst [vmem:[%s67] sm:%s3] %v66
    %s69 = smul.addr 2, 2
    %s70 = scalar_lea.vmem %s0, %s69
    %v71 = vld [vmem:[%s70] sm:%s3]
    %s72 = scalar_lea.vmem [#allocation0], 16
    %73 = vst [vmem:[%s72] sm:%s3] %v71
    %s74 = scalar_lea.vmem %s0, 2
    %v75 = vld [vmem:[%s74] sm:%s3]
    %s76 = scalar_lea.vmem [#allocation0], 8
    %77 = vst [vmem:[%s76] sm:%s3] %v75
    %v78 = vld [vmem:[%s0] sm:%s3]
    %79 = vst [vmem:[#allocation0] sm:%s3] %v78
    %v80 = vld [vmem:[#allocation0] ss:$8 sm:$0xf]
    %v81 = vld [vmem:[#allocation0] ss:$8 sm:$0xf0]
    %vm82 = vcmask 1047556
    %v83 = vsel %vm82, %v81, %v80
    %vm84 = vcmask 64512
    %85 = vst.msk [vmem:[%s1] sm:$0xff] %vm84, %v83
    %s86 = scalar_lea.vmem [#allocation0], 64
    %v87 = vld [vmem:[%s86] ss:$8 sm:$0xf]
    %s88 = scalar_lea.vmem [#allocation0], 64
    %v89 = vld [vmem:[%s88] ss:$8 sm:$0xf0]
    %vm90 = vcmask 1047556
    %v91 = vsel %vm90, %v89, %v87
    %vm92 = vcmask 64512
    %s93 = scalar_lea.vmem %s1, 8
    %94 = vst.msk [vmem:[%s93] sm:$0xff] %vm92, %v91
    %s95 = scalar_lea.vmem [#allocation0], 1
    %v96 = vld [vmem:[%s95] ss:$8 sm:$0xf]
    %s97 = scalar_lea.vmem [#allocation0], 1
    %v98 = vld [vmem:[%s97] ss:$8 sm:$0xf0]
    %vm99 = vcmask 1047556
    %v100 = vsel %vm99, %v98, %v96
    %101 = vrot.lane.b32.xlu0 %v100, 8
    %v102 = vpop.permute.xlu0 %101
    %vm103 = vcmask 130112
    %104 = vst.msk [vmem:[%s1] sm:$0xff] %vm103, %v102
    %s105 = scalar_lea.vmem [#allocation0], 65
    %v106 = vld [vmem:[%s105] ss:$8 sm:$0xf]
    %s107 = scalar_lea.vmem [#allocation0], 65
    %v108 = vld [vmem:[%s107] ss:$8 sm:$0xf0]
    %vm109 = vcmask 1047556
    %v110 = vsel %vm109, %v108, %v106
    %111 = vrot.lane.b32.xlu0 %v110, 8
    %v112 = vpop.permute.xlu0 %111
    %vm113 = vcmask 130112
    %s114 = scalar_lea.vmem %s1, 8
    %115 = vst.msk [vmem:[%s114] sm:$0xff] %vm113, %v112

// kernel: pallas_decoder_layer.1
$region0: #{pallas_decoder_layer.1}
  #allocation0 [shape = 'u32[]', space=smem, size = 0x4, offset = 0x4, fixed_abs, tag = 'smem constant byte address 0x4 - core index']
  #allocation1 [shape = 'u32[144,128]{1,0:T(1,128)}', space=vmem, size = 0x12000, scoped, tag = 'internal scratch']
  %s0 = inlined_call_operand.vmem [shape: f32[2,8,32], index: 0, kind: input, shape index: {}]
  %s1 = inlined_call_operand.vmem [shape: f32[2,8,48], index: 1, kind: input, shape index: {}]
  %s2 = inlined_call_operand.vmem [shape: f32[2,8,48], index: 2, kind: input, shape index: {}]
  %s3 = inlined_call_operand.vmem [shape: f32[48,48], index: 3, kind: input, shape index: {}]
  %s4 = inlined_call_operand.vmem [shape: f32[1,32], index: 4, kind: input, shape index: {}]
  %s5 = inlined_call_operand.vmem [shape: f32[32,64], index: 5, kind: input, shape index: {}]
  %s6 = inlined_call_operand.vmem [shape: f32[32,32], index: 6, kind: input, shape index: {}]
  %s7 = inlined_call_operand.vmem [shape: f32[1,32], index: 7, kind: input, shape index: {}]
  %s8 = inlined_call_operand.vmem [shape: f32[32,128], index: 8, kind: input, shape index: {}]
  %s9 = inlined_call_operand.vmem [shape: f32[64,32], index: 9, kind: input, shape index: {}]
  %s10 = inlined_call_operand.hbm [shape: f32[2,8,32], index: 10, kind: output, shape index: {}]
  %s11 = sld [smem:[#allocation0]]
  $region73: #{pallas_decoder_layer.1} parent=0
    _
  %s13 = ssub.s32 1, %s11
  %s14 = scalar_select 0, %s13, %s11
  $region1: #{pallas_decoder_layer.1} parent=0
    #allocation2 [shape = 'u8[8192]{0}', space=vmem, size = 0x2000, scoped, tag = 'output window, operand 0']
    #allocation3 [shape = 's32[2]{0}', space=sflag, size = 0x8, scoped, tag = 'scoped memory for pallas_decoder_layer.1']
    %15 = vsyncpa [#allocation3], 0
    %s16 = scalar_lea.sflag [#allocation3], 1
    %17 = vsyncpa %s16, 0
    loop: start=0, step=1, limit=4
    $region2: #{pallas_decoder_layer.1} parent=1 // loop_pre_header
      _
    $region3: #{pallas_decoder_layer.1} parent=1 // loop_header
      %s19 = sphi 0, %s23
      %p20 = scmp.ge.s32.totalorder %s19, 4
      %s29 = sphi 0, %s31
      %s32 = sphi 0, %s29
      %s33 = sphi 0, %s32
      %s49 = sphi 0, %s33
      %s55 = sphi 0, %s57
      %s58 = sphi 0, %s55
      %s59 = sphi 0, %s58
      %s75 = sphi 0, %s59
      %s81 = sphi 0, %s83
      %s84 = sphi 0, %s81
      %s85 = sphi 0, %s84
      %s101 = sphi 0, %s85
      %s105 = sphi 0, %s105
      %s107 = sphi 0, %s105
      %s108 = sphi 0, %s107
      %s122 = sphi 0, %s108
      %s126 = sphi 0, %s126
      %s128 = sphi 0, %s126
      %s129 = sphi 0, %s128
      %s143 = sphi 0, %s129
      %s147 = sphi 0, %s147
      %s149 = sphi 0, %s147
      %s150 = sphi 0, %s149
      %s164 = sphi 0, %s150
      %s168 = sphi 0, %s168
      %s170 = sphi 0, %s168
      %s171 = sphi 0, %s170
      %s185 = sphi 0, %s171
      %s189 = sphi 0, %s189
      %s191 = sphi 0, %s189
      %s192 = sphi 0, %s191
      %s206 = sphi 0, %s192
      %s210 = sphi 0, %s210
      %s212 = sphi 0, %s210
      %s213 = sphi 0, %s212
      %s227 = sphi 0, %s213
      %s231 = sphi 0, %s231
      %s233 = sphi 0, %s231
      %s234 = sphi 0, %s233
      %s248 = sphi 0, %s234
      %s254 = sphi 0, %s256
      %s257 = sphi 0, %s254
      %s258 = sphi 0, %s257
      %s274 = sphi 0, %s258
    $region4: #{pallas_decoder_layer.1} parent=1 // loop_header_branch
      %22 = sbr.rel (%p20) target = $region8
    $region5: #{pallas_decoder_layer.1} parent=1 // loop_body
      %s24 = ssub.s32 %s19, 1
      %s25 = ssub.s32 %s19, 2
      %s26 = sadd.s32 %s19, 1
      %s27 = ssub.s32 %s19, %s26
      %p28 = scmp.eq.s32.totalorder %s27, 0
      %s30 = sadd.s32 %s29, 1
      %s31 = scalar_select %p28, %s29, %s30
      %p34 = pneg %p28
      %p35 = scmp.eq.s32.totalorder %s19, 1
      %p36 = por %p34, %p35
      %p37 = scmp.ne.s32.totalorder %s29, %s32
      %p38 = scmp.eq.s32.totalorder %s19, 0
      %p39 = por %p37, %p38
      %p40 = scmp.ne.s32.totalorder %s29, %s32
      %p41 = scmp.eq.s32.totalorder %s24, 1
      %p42 = por %p40, %p41
      %p43 = scmp.ne.s32.totalorder %s32, %s33
      %p44 = scmp.eq.s32.totalorder %s24, 0
      %p45 = por %p43, %p44
      %p46 = scmp.ne.s32.totalorder %s32, %s33
      %p47 = scmp.eq.s32.totalorder %s25, 1
      %p48 = por %p46, %p47
      %p50 = scmp.ne.s32.totalorder %s33, %s49
      %p51 = scmp.eq.s32.totalorder %s25, 0
      %p52 = por %p50, %p51
      %s53 = ssub.s32 %s19, %s26
      %p54 = scmp.eq.s32.totalorder %s53, 0
      %s56 = sadd.s32 %s55, 1
      %s57 = scalar_select %p54, %s55, %s56
      %p60 = pneg %p54
      %p61 = scmp.eq.s32.totalorder %s19, 1
      %p62 = por %p60, %p61
      %p63 = scmp.ne.s32.totalorder %s55, %s58
      %p64 = scmp.eq.s32.totalorder %s19, 0
      %p65 = por %p63, %p64
      %p66 = scmp.ne.s32.totalorder %s55, %s58
      %p67 = scmp.eq.s32.totalorder %s24, 1
      %p68 = por %p66, %p67
      %p69 = scmp.ne.s32.totalorder %s58, %s59
      %p70 = scmp.eq.s32.totalorder %s24, 0
      %p71 = por %p69, %p70
      %p72 = scmp.ne.s32.totalorder %s58, %s59
      %p73 = scmp.eq.s32.totalorder %s25, 1
      %p74 = por %p72, %p73
      %p76 = scmp.ne.s32.totalorder %s59, %s75
      %p77 = scmp.eq.s32.totalorder %s25, 0
      %p78 = por %p76, %p77
      %s79 = ssub.s32 %s19, %s26
      %p80 = scmp.eq.s32.totalorder %s79, 0
      %s82 = sadd.s32 %s81, 1
      %s83 = scalar_select %p80, %s81, %s82
      %p86 = pneg %p80
      %p87 = scmp.eq.s32.totalorder %s19, 1
      %p88 = por %p86, %p87
      %p89 = scmp.ne.s32.totalorder %s81, %s84
      %p90 = scmp.eq.s32.totalorder %s19, 0
      %p91 = por %p89, %p90
      %p92 = scmp.ne.s32.totalorder %s81, %s84
      %p93 = scmp.eq.s32.totalorder %s24, 1
      %p94 = por %p92, %p93
      %p95 = scmp.ne.s32.totalorder %s84, %s85
      %p96 = scmp.eq.s32.totalorder %s24, 0
      %p97 = por %p95, %p96
      %p98 = scmp.ne.s32.totalorder %s84, %s85
      %p99 = scmp.eq.s32.totalorder %s25, 1
      %p100 = por %p98, %p99
      %p102 = scmp.ne.s32.totalorder %s85, %s101
      %p103 = scmp.eq.s32.totalorder %s25, 0
      %p104 = por %p102, %p103
      %s106 = sadd.s32 %s105, 1
      %p109 = scmp.eq.s32.totalorder %s19, 1
      %p110 = scmp.ne.s32.totalorder %s105, %s107
      %p111 = scmp.eq.s32.totalorder %s19, 0
      %p112 = por %p110, %p111
      %p113 = scmp.ne.s32.totalorder %s105, %s107
      %p114 = scmp.eq.s32.totalorder %s24, 1
      %p115 = por %p113, %p114
      %p116 = scmp.ne.s32.totalorder %s107, %s108
      %p117 = scmp.eq.s32.totalorder %s24, 0
      %p118 = por %p116, %p117
      %p119 = scmp.ne.s32.totalorder %s107, %s108
      %p120 = scmp.eq.s32.totalorder %s25, 1
      %p121 = por %p119, %p120
      %p123 = scmp.ne.s32.totalorder %s108, %s122
      %p124 = scmp.eq.s32.totalorder %s25, 0
      %p125 = por %p123, %p124
      %s127 = sadd.s32 %s126, 1
      %p130 = scmp.eq.s32.totalorder %s19, 1
      %p131 = scmp.ne.s32.totalorder %s126, %s128
      %p132 = scmp.eq.s32.totalorder %s19, 0
      %p133 = por %p131, %p132
      %p134 = scmp.ne.s32.totalorder %s126, %s128
      %p135 = scmp.eq.s32.totalorder %s24, 1
      %p136 = por %p134, %p135
      %p137 = scmp.ne.s32.totalorder %s128, %s129
      %p138 = scmp.eq.s32.totalorder %s24, 0
      %p139 = por %p137, %p138
      %p140 = scmp.ne.s32.totalorder %s128, %s129
      %p141 = scmp.eq.s32.totalorder %s25, 1
      %p142 = por %p140, %p141
      %p144 = scmp.ne.s32.totalorder %s129, %s143
      %p145 = scmp.eq.s32.totalorder %s25, 0
      %p146 = por %p144, %p145
      %s148 = sadd.s32 %s147, 1
      %p151 = scmp.eq.s32.totalorder %s19, 1
      %p152 = scmp.ne.s32.totalorder %s147, %s149
      %p153 = scmp.eq.s32.totalorder %s19, 0
      %p154 = por %p152, %p153
      %p155 = scmp.ne.s32.totalorder %s147, %s149
      %p156 = scmp.eq.s32.totalorder %s24, 1
      %p157 = por %p155, %p156
      %p158 = scmp.ne.s32.totalorder %s149, %s150
      %p159 = scmp.eq.s32.totalorder %s24, 0
      %p160 = por %p158, %p159
      %p161 = scmp.ne.s32.totalorder %s149, %s150
      %p162 = scmp.eq.s32.totalorder %s25, 1
      %p163 = por %p161, %p162
      %p165 = scmp.ne.s32.totalorder %s150, %s164
      %p166 = scmp.eq.s32.totalorder %s25, 0
      %p167 = por %p165, %p166
      %s169 = sadd.s32 %s168, 1
      %p172 = scmp.eq.s32.totalorder %s19, 1
      %p173 = scmp.ne.s32.totalorder %s168, %s170
      %p174 = scmp.eq.s32.totalorder %s19, 0
      %p175 = por %p173, %p174
      %p176 = scmp.ne.s32.totalorder %s168, %s170
      %p177 = scmp.eq.s32.totalorder %s24, 1
      %p178 = por %p176, %p177
      %p179 = scmp.ne.s32.totalorder %s170, %s171
      %p180 = scmp.eq.s32.totalorder %s24, 0
      %p181 = por %p179, %p180
      %p182 = scmp.ne.s32.totalorder %s170, %s171
      %p183 = scmp.eq.s32.totalorder %s25, 1
      %p184 = por %p182, %p183
      %p186 = scmp.ne.s32.totalorder %s171, %s185
      %p187 = scmp.eq.s32.totalorder %s25, 0
      %p188 = por %p186, %p187
      %s190 = sadd.s32 %s189, 1
      %p193 = scmp.eq.s32.totalorder %s19, 1
      %p194 = scmp.ne.s32.totalorder %s189, %s191
      %p195 = scmp.eq.s32.totalorder %s19, 0
      %p196 = por %p194, %p195
      %p197 = scmp.ne.s32.totalorder %s189, %s191
      %p198 = scmp.eq.s32.totalorder %s24, 1
      %p199 = por %p197, %p198
      %p200 = scmp.ne.s32.totalorder %s191, %s192
      %p201 = scmp.eq.s32.totalorder %s24, 0
      %p202 = por %p200, %p201
      %p203 = scmp.ne.s32.totalorder %s191, %s192
      %p204 = scmp.eq.s32.totalorder %s25, 1
      %p205 = por %p203, %p204
      %p207 = scmp.ne.s32.totalorder %s192, %s206
      %p208 = scmp.eq.s32.totalorder %s25, 0
      %p209 = por %p207, %p208
      %s211 = sadd.s32 %s210, 1
      %p214 = scmp.eq.s32.totalorder %s19, 1
      %p215 = scmp.ne.s32.totalorder %s210, %s212
      %p216 = scmp.eq.s32.totalorder %s19, 0
      %p217 = por %p215, %p216
      %p218 = scmp.ne.s32.totalorder %s210, %s212
      %p219 = scmp.eq.s32.totalorder %s24, 1
      %p220 = por %p218, %p219
      %p221 = scmp.ne.s32.totalorder %s212, %s213
      %p222 = scmp.eq.s32.totalorder %s24, 0
      %p223 = por %p221, %p222
      %p224 = scmp.ne.s32.totalorder %s212, %s213
      %p225 = scmp.eq.s32.totalorder %s25, 1
      %p226 = por %p224, %p225
      %p228 = scmp.ne.s32.totalorder %s213, %s227
      %p229 = scmp.eq.s32.totalorder %s25, 0
      %p230 = por %p228, %p229
      %s232 = sadd.s32 %s231, 1
      %p235 = scmp.eq.s32.totalorder %s19, 1
      %p236 = scmp.ne.s32.totalorder %s231, %s233
      %p237 = scmp.eq.s32.totalorder %s19, 0
      %p238 = por %p236, %p237
      %p239 = scmp.ne.s32.totalorder %s231, %s233
      %p240 = scmp.eq.s32.totalorder %s24, 1
      %p241 = por %p239, %p240
      %p242 = scmp.ne.s32.totalorder %s233, %s234
      %p243 = scmp.eq.s32.totalorder %s24, 0
      %p244 = por %p242, %p243
      %p245 = scmp.ne.s32.totalorder %s233, %s234
      %p246 = scmp.eq.s32.totalorder %s25, 1
      %p247 = por %p245, %p246
      %p249 = scmp.ne.s32.totalorder %s234, %s248
      %p250 = scmp.eq.s32.totalorder %s25, 0
      %p251 = por %p249, %p250
      %s252 = ssub.s32 %s19, %s26
      %p253 = scmp.eq.s32.totalorder %s252, 0
      %s255 = sadd.s32 %s254, 1
      %s256 = scalar_select %p253, %s254, %s255
      %p259 = pneg %p253
      %p260 = scmp.eq.s32.totalorder %s19, 1
      %p261 = por %p259, %p260
      %p262 = scmp.ne.s32.totalorder %s254, %s257
      %p263 = scmp.eq.s32.totalorder %s19, 0
      %p264 = por %p262, %p263
      %p265 = scmp.ne.s32.totalorder %s254, %s257
      %p266 = scmp.eq.s32.totalorder %s24, 1
      %p267 = por %p265, %p266
      %p268 = scmp.ne.s32.totalorder %s257, %s258
      %p269 = scmp.eq.s32.totalorder %s24, 0
      %p270 = por %p268, %p269
      %p271 = scmp.ne.s32.totalorder %s257, %s258
      %p272 = scmp.eq.s32.totalorder %s25, 1
      %p273 = por %p271, %p272
      %p275 = scmp.ne.s32.totalorder %s258, %s274
      %p276 = scmp.eq.s32.totalorder %s25, 0
      %p277 = por %p275, %p276
      %p278 = scmp.le.s32.totalorder 1, %s19
      %p279 = scmp.lt.s32.totalorder %s19, 3
      %p280 = pnand %p278, %p279
      %p281 = pneg %p280
      // Predicated region
      $region9: #{pallas_decoder_layer.1} parent=5 // pred_check
        _
      $region10: #{pallas_decoder_layer.1} parent=5 // pred_check_branch
        %283 = sbr.rel (%p280) target = $region12
      $region11: #{pallas_decoder_layer.1} parent=5 // pred_region
        %s284 = ssub.s32 %s19, 1
        // Predicated region
        $region13: #{pallas_decoder_layer.1} parent=11 // pred_check
          %p285 = pneg %p118
        $region14: #{pallas_decoder_layer.1} parent=11 // pred_check_branch
          %287 = sbr.rel (%p285) target = $region16
        $region15: #{pallas_decoder_layer.1} parent=11 // pred_region
          _
        $region16: #{pallas_decoder_layer.1} parent=11 // pred_fallthru
          _
        // Predicated region
        $region17: #{pallas_decoder_layer.1} parent=11 // pred_check
          %p288 = pneg %p139
        $region18: #{pallas_decoder_layer.1} parent=11 // pred_check_branch
          %290 = sbr.rel (%p288) target = $region20
        $region19: #{pallas_decoder_layer.1} parent=11 // pred_region
          _
        $region20: #{pallas_decoder_layer.1} parent=11 // pred_fallthru
          _
        // Predicated region
        $region21: #{pallas_decoder_layer.1} parent=11 // pred_check
          %p291 = pneg %p160
        $region22: #{pallas_decoder_layer.1} parent=11 // pred_check_branch
          %293 = sbr.rel (%p291) target = $region24
        $region23: #{pallas_decoder_layer.1} parent=11 // pred_region
          _
        $region24: #{pallas_decoder_layer.1} parent=11 // pred_fallthru
          _
        // Predicated region
        $region25: #{pallas_decoder_layer.1} parent=11 // pred_check
          %p294 = pneg %p181
        $region26: #{pallas_decoder_layer.1} parent=11 // pred_check_branch
          %296 = sbr.rel (%p294) target = $region28
        $region27: #{pallas_decoder_layer.1} parent=11 // pred_region
          _
        $region28: #{pallas_decoder_layer.1} parent=11 // pred_fallthru
          _
        // Predicated region
        $region29: #{pallas_decoder_layer.1} parent=11 // pred_check
          %p297 = pneg %p202
        $region30: #{pallas_decoder_layer.1} parent=11 // pred_check_branch
          %299 = sbr.rel (%p297) target = $region32
        $region31: #{pallas_decoder_layer.1} parent=11 // pred_region
          _
        $region32: #{pallas_decoder_layer.1} parent=11 // pred_fallthru
          _
        // Predicated region
        $region33: #{pallas_decoder_layer.1} parent=11 // pred_check
          %p300 = pneg %p223
        $region34: #{pallas_decoder_layer.1} parent=11 // pred_check_branch
          %302 = sbr.rel (%p300) target = $region36
        $region35: #{pallas_decoder_layer.1} parent=11 // pred_region
          _
        $region36: #{pallas_decoder_layer.1} parent=11 // pred_fallthru
          _
        // Predicated region
        $region37: #{pallas_decoder_layer.1} parent=11 // pred_check
          %p303 = pneg %p244
        $region38: #{pallas_decoder_layer.1} parent=11 // pred_check_branch
          %305 = sbr.rel (%p303) target = $region40
        $region39: #{pallas_decoder_layer.1} parent=11 // pred_region
          _
        $region40: #{pallas_decoder_layer.1} parent=11 // pred_fallthru
          _
      $region12: #{pallas_decoder_layer.1} parent=5 // pred_fallthru
        _
      %p306 = scmp.lt.s32.totalorder %s19, 2
      // Predicated region
      $region41: #{pallas_decoder_layer.1} parent=5 // pred_check
        %p307 = pneg %p306
      $region42: #{pallas_decoder_layer.1} parent=5 // pred_check_branch
        %309 = sbr.rel (%p307) target = $region44
      $region43: #{pallas_decoder_layer.1} parent=5 // pred_region
        // Predicated region
        $region45: #{pallas_decoder_layer.1} parent=43 // pred_check
          %p310 = pneg %p39
        $region46: #{pallas_decoder_layer.1} parent=43 // pred_check_branch
          %312 = sbr.rel (%p310) target = $region48
        $region47: #{pallas_decoder_layer.1} parent=43 // pred_region
          %p313 = scmp.lt.s32.totalorder %s19, 1
          %s314 = scalar_select %p313, %s19, 1
          %s315 = smul.addr %s314, 8
          %s316 = scalar_lea.vmem %s0, %s315
        $region48: #{pallas_decoder_layer.1} parent=43 // pred_fallthru
          _
        // Predicated region
        $region49: #{pallas_decoder_layer.1} parent=43 // pred_check
          %p317 = pneg %p65
        $region50: #{pallas_decoder_layer.1} parent=43 // pred_check_branch
          %319 = sbr.rel (%p317) target = $region52
        $region51: #{pallas_decoder_layer.1} parent=43 // pred_region
          %p320 = scmp.lt.s32.totalorder %s19, 1
          %s321 = scalar_select %p320, %s19, 1
          %s322 = smul.addr %s321, 8
          %s323 = scalar_lea.vmem %s1, %s322
        $region52: #{pallas_decoder_layer.1} parent=43 // pred_fallthru
          _
        // Predicated region
        $region53: #{pallas_decoder_layer.1} parent=43 // pred_check
          %p324 = pneg %p91
        $region54: #{pallas_decoder_layer.1} parent=43 // pred_check_branch
          %326 = sbr.rel (%p324) target = $region56
        $region55: #{pallas_decoder_layer.1} parent=43 // pred_region
          %p327 = scmp.lt.s32.totalorder %s19, 1
          %s328 = scalar_select %p327, %s19, 1
          %s329 = smul.addr %s328, 8
          %s330 = scalar_lea.vmem %s2, %s329
        $region56: #{pallas_decoder_layer.1} parent=43 // pred_fallthru
          _
      $region44: #{pallas_decoder_layer.1} parent=5 // pred_fallthru
        _
      %p331 = scmp.le.s32.totalorder 1, %s19
      %p332 = scmp.lt.s32.totalorder %s19, 3
      %p333 = pnand %p331, %p332
      %p334 = pneg %p333
      // Predicated region
      $region57: #{pallas_decoder_layer.1} parent=5 // pred_check
        _
      $region58: #{pallas_decoder_layer.1} parent=5 // pred_check_branch
        %336 = sbr.rel (%p333) target = $region60
      $region59: #{pallas_decoder_layer.1} parent=5 // pred_region
        %s337 = ssub.s32 %s19, 1
        %p338 = scmp.lt.s32.totalorder %s24, 1
        %s339 = scalar_select %p338, %s24, 1
        %s340 = smul.addr %s339, 8
        %s341 = scalar_lea.vmem %s0, %s340
        %p342 = pneg %p45
        %p343 = pneg %p42
        %p344 = scmp.lt.s32.totalorder %s24, 1
        %s345 = scalar_select %p344, %s24, 1
        %s346 = smul.addr %s345, 8
        %s347 = scalar_lea.vmem %s1, %s346
        %p348 = pneg %p71
        %p349 = pneg %p68
        %p350 = scmp.lt.s32.totalorder %s24, 1
        %s351 = scalar_select %p350, %s24, 1
        %s352 = smul.addr %s351, 8
        %s353 = scalar_lea.vmem %s2, %s352
        %p354 = pneg %p97
        %p355 = pneg %p94
        %p356 = pneg %p118
        %p357 = pneg %p115
        %p358 = pneg %p139
        %p359 = pneg %p136
        %p360 = pneg %p160
        %p361 = pneg %p157
        %p362 = pneg %p181
        %p363 = pneg %p178
        %p364 = pneg %p202
        %p365 = pneg %p199
        %p366 = pneg %p223
        %p367 = pneg %p220
        %p368 = pneg %p244
        %p369 = pneg %p241
        %p370 = pneg %p270
        %p371 = pneg %p267
        %s372 = sand.u32 %s257, 1
        %s373 = scalar_lea.sflag [#allocation3], %s372
        %s374 = sand.u32 %s257, 1
        %s375 = smul.addr %s374, 8
        %s376 = scalar_lea.vmem [#allocation2], %s375
        %p377 = scmp.lt.s32.totalorder %s24, 1
        %s378 = scalar_select %p377, %s24, 1
        %s379 = smul.addr %s378, 8
        %s380 = scalar_lea.vmem %s0, %s379
        %p381 = scmp.lt.s32.totalorder %s24, 1
        %s382 = scalar_select %p381, %s24, 1
        %s383 = smul.addr %s382, 8
        %s384 = scalar_lea.vmem %s1, %s383
        %p385 = scmp.lt.s32.totalorder %s24, 1
        %s386 = scalar_select %p385, %s24, 1
        %s387 = smul.addr %s386, 8
        %s388 = scalar_lea.vmem %s2, %s387
        %v389 = vld [vmem:[%s380] sm:$0xff]
        %v390 = vmul.f32 %v389, %v389
        %vm391 = vcmask 261120
        %v392 = vsel %vm391, %v390, 0.0
        %393 = vadd.xlane.f32.xlu0 %v392
        %v394 = vpop.xlane.xlu0 %393
        %v395 = vrcp.pop 32.0
        %v396 = vmul.f32 %v394, %v395
        %v397 = vadd.f32 %v396, 1e-06
        %v398 = vrsqrt.pop %v397
        %v399 = vmul.f32 %v389, %v398
        %v400 = vld [vmem:[%s4] sm:$0x1]
        %v402 = vlaneseq
        %v403 = vshrl.u32 %v402, 7
        %v404 = vsub.s32 0, %v403
        %v405 = vrot.slane %v400, %v404
        %v407 = vmul.f32 %v399, %v405
        %v408 = vld [vmem:[%s5] sm:$0xff]
        %v409 = vld [vmem:[%s5 + $0x8] sm:$0xff]
        %v410 = vld [vmem:[%s5 + $0x10] sm:$0xff]
        %v411 = vld [vmem:[%s5 + $0x18] sm:$0xff]
        %v413 = vsel %vm391, %v407, 0
        %415 = vmatprep.subr.mxu0 0.0
        %416 = vmatpush1.msra.mxu0 %v408
        %417 = vmatprep.subr.mxu0 0.0
        %418 = vmatpush1.msra.mxu0 %v409
        %419 = vmatprep.subr.mxu0 0.0
        %420 = vmatpush1.msra.mxu0 %v410
        %421 = vmatprep.subr.mxu0 0.0
        %422 = vmatpush1.msra.mxu0 %v411
        %423 = vmatprep.subr.mxu0 0.0
        %424 = vmatpush1.msra.mxu0 0.0
        %425 = vmatprep.subr.mxu0 0.0
        %426 = vmatpush1.msra.mxu0 0.0
        %427 = vmatprep.subr.mxu0 0.0
        %428 = vmatpush1.msra.mxu0 0.0
        %429 = vmatprep.subr.mxu0 0.0
        %430 = vmatpush1.msra.mxu0 0.0
        %431 = vmatprep.subr.mxu0 0.0
        %432 = vmatpush1.msra.mxu0 0.0
        %433 = vmatprep.subr.mxu0 0.0
        %434 = vmatpush1.msra.mxu0 0.0
        %435 = vmatprep.subr.mxu0 0.0
        %436 = vmatpush1.msra.mxu0 0.0
        %437 = vmatprep.subr.mxu0 0.0
        %438 = vmatpush1.msra.mxu0 0.0
        %439 = vmatprep.subr.mxu0 0.0
        %440 = vmatpush1.msra.mxu0 0.0
        %441 = vmatprep.subr.mxu0 0.0
        %442 = vmatpush1.msra.mxu0 0.0
        %443 = vmatprep.subr.mxu0 0.0
        %444 = vmatpush1.msra.mxu0 0.0
        %445 = vmatprep.subr.mxu0 0.0
        %446 = vmatpush1.msra.mxu0 0.0
        %447 = vmatprep.subr.mxu0 0.0
        %448 = vmatpush1.msra.mxu0 0.0
        %449 = vmatprep.subr.mxu0 0.0
        %450 = vmatpush1.msra.mxu0 0.0
        %451 = vmatprep.subr.mxu0 0.0
        %452 = vmatpush1.msra.mxu0 0.0
        %453 = vmatprep.subr.mxu0 0.0
        %454 = vmatpush1.msra.mxu0 0.0
        %455 = vmatprep.subr.mxu0 0.0
        %456 = vmatpush1.msra.mxu0 0.0
        %457 = vmatprep.subr.mxu0 0.0
        %458 = vmatpush1.msra.mxu0 0.0
        %459 = vmatprep.subr.mxu0 0.0
        %460 = vmatpush1.msra.mxu0 0.0
        %461 = vmatprep.subr.mxu0 0.0
        %462 = vmatpush1.msra.mxu0 0.0
        %463 = vmatprep.subr.mxu0 0.0
        %464 = vmatpush1.msra.mxu0 0.0
        %465 = vmatprep.subr.mxu0 0.0
        %466 = vmatpush1.msra.mxu0 0.0
        %467 = vmatprep.subr.mxu0 0.0
        %468 = vmatpush1.msra.mxu0 0.0
        %469 = vmatprep.subr.mxu0 0.0
        %470 = vmatpush1.msra.mxu0 0.0
        %471 = vmatprep.subr.mxu0 0.0
        %472 = vmatpush1.msra.mxu0 0.0
        %473 = vmatprep.subr.mxu0 0.0
        %474 = vmatpush1.msra.mxu0 0.0
        %475 = vmatprep.subr.mxu0 0.0
        %476 = vmatpush1.msra.mxu0 0.0
        %477 = vmatprep.subr.mxu0 0.0
        %478 = vmatpush1.msra.mxu0 0.0
        %479 = vmatprep.mubr.f32.mxu0 0.0
        %480 = vmatmul.mubr.f32.gmra.mrb[0].mxu0 %v413
        %v481 = vpop.f32.mrb[0].mxu0
        %v482 = vadd.f32 0.0, %v481
        %v483 = vpop.f32.mrb[0].mxu0
        %484 = vdwg.mxu0
        %v485 = vld [vmem:[%s3] sm:$0xff]
        %v486 = vld [vmem:[%s3 + $0x8] sm:$0xff]
        %v487 = vld [vmem:[%s3 + $0x10] sm:$0xff]
        %v488 = vld [vmem:[%s3 + $0x18] sm:$0xff]
        %v489 = vld [vmem:[%s3 + $0x20] sm:$0xff]
        %v490 = vld [vmem:[%s3 + $0x28] sm:$0xff]
        %vm491 = vcmask 392192
        %v493 = vsel %vm491, %v482, 0
        %495 = vmatprep.subr.mxu0 0.0
        %496 = vmatpush1.msra.mxu0 %v485
        %497 = vmatprep.subr.mxu0 0.0
        %498 = vmatpush1.msra.mxu0 %v486
        %499 = vmatprep.subr.mxu0 0.0
        %500 = vmatpush1.msra.mxu0 %v487
        %501 = vmatprep.subr.mxu0 0.0
        %502 = vmatpush1.msra.mxu0 %v488
        %503 = vmatprep.subr.mxu0 0.0
        %504 = vmatpush1.msra.mxu0 %v489
        %505 = vmatprep.subr.mxu0 0.0
        %506 = vmatpush1.msra.mxu0 %v490
        %507 = vmatprep.subr.mxu0 0.0
        %508 = vmatpush1.msra.mxu0 0.0
        %509 = vmatprep.subr.mxu0 0.0
        %510 = vmatpush1.msra.mxu0 0.0
        %511 = vmatprep.subr.mxu0 0.0
        %512 = vmatpush1.msra.mxu0 0.0
        %513 = vmatprep.subr.mxu0 0.0
        %514 = vmatpush1.msra.mxu0 0.0
        %515 = vmatprep.subr.mxu0 0.0
        %516 = vmatpush1.msra.mxu0 0.0
        %517 = vmatprep.subr.mxu0 0.0
        %518 = vmatpush1.msra.mxu0 0.0
        %519 = vmatprep.subr.mxu0 0.0
        %520 = vmatpush1.msra.mxu0 0.0
        %521 = vmatprep.subr.mxu0 0.0
        %522 = vmatpush1.msra.mxu0 0.0
        %523 = vmatprep.subr.mxu0 0.0
        %524 = vmatpush1.msra.mxu0 0.0
        %525 = vmatprep.subr.mxu0 0.0
        %526 = vmatpush1.msra.mxu0 0.0
        %527 = vmatprep.subr.mxu0 0.0
        %528 = vmatpush1.msra.mxu0 0.0
        %529 = vmatprep.subr.mxu0 0.0
        %530 = vmatpush1.msra.mxu0 0.0
        %531 = vmatprep.subr.mxu0 0.0
        %532 = vmatpush1.msra.mxu0 0.0
        %533 = vmatprep.subr.mxu0 0.0
        %534 = vmatpush1.msra.mxu0 0.0
        %535 = vmatprep.subr.mxu0 0.0
        %536 = vmatpush1.msra.mxu0 0.0
        %537 = vmatprep.subr.mxu0 0.0
        %538 = vmatpush1.msra.mxu0 0.0
        %539 = vmatprep.subr.mxu0 0.0
        %540 = vmatpush1.msra.mxu0 0.0
        %541 = vmatprep.subr.mxu0 0.0
        %542 = vmatpush1.msra.mxu0 0.0
        %543 = vmatprep.subr.mxu0 0.0
        %544 = vmatpush1.msra.mxu0 0.0
        %545 = vmatprep.subr.mxu0 0.0
        %546 = vmatpush1.msra.mxu0 0.0
        %547 = vmatprep.subr.mxu0 0.0
        %548 = vmatpush1.msra.mxu0 0.0
        %549 = vmatprep.subr.mxu0 0.0
        %550 = vmatpush1.msra.mxu0 0.0
        %551 = vmatprep.subr.mxu0 0.0
        %552 = vmatpush1.msra.mxu0 0.0
        %553 = vmatprep.subr.mxu0 0.0
        %554 = vmatpush1.msra.mxu0 0.0
        %555 = vmatprep.subr.mxu0 0.0
        %556 = vmatpush1.msra.mxu0 0.0
        %557 = vmatprep.subr.mxu0 0.0
        %558 = vmatpush1.msra.mxu0 0.0
        %559 = vmatprep.mubr.f32.mxu0 0.0
        %560 = vmatmul.mubr.f32.gmra.mrb[0].mxu0 %v493
        %v561 = vpop.f32.mrb[0].mxu0
        %v562 = vadd.f32 0.0, %v561
        %v563 = vpop.f32.mrb[0].mxu0
        %564 = vdwg.mxu0
        %v565 = vld [vmem:[%s384] sm:$0xff]
        %v566 = vmul.f32 %v482, %v565
        %v567 = vld [vmem:[%s388] sm:$0xff]
        %v568 = vmul.f32 %v562, %v567
        %v569 = vadd.f32 %v566, %v568
        %v570 = vlaneseq
        %v571 = vshrl.u32 %v570, 7
        %v572 = vlaneseq
        %v573 = vand.u32 %v572, 127
        %vm574 = vcmp.ge.s32.totalorder %v571, %v573
        %v575 = vsel %vm574, 0.0, -1e+09
        %v576 = vld [vmem:[%s6] sm:$0xff]
        %v577 = vld [vmem:[%s6 + $0x8] sm:$0xff]
        %v578 = vld [vmem:[%s6 + $0x10] sm:$0xff]
        %v579 = vld [vmem:[%s6 + $0x18] sm:$0xff]
        %581 = vrot.lane.b32.xlu0 %v569, 96
        %v582 = vpop.permute.xlu0 %581
        %vm583 = vcmask 64512
        %v584 = vsel %vm583, %v569, 0
        %v586 = vsel %vm583, %v582, 0
        %588 = vmatprep.subr.mxu0 0.0
        %589 = vmatpush1.xpose.msra.mxu0 %v586
        %590 = vmatprep.subr.mxu0 0.0
        %591 = vmatpush1.xpose.msra.mxu0 0.0
        %592 = vmatprep.subr.mxu0 0.0
        %593 = vmatpush1.xpose.msra.mxu0 0.0
        %594 = vmatprep.subr.mxu0 0.0
        %595 = vmatpush1.xpose.msra.mxu0 0.0
        %596 = vmatprep.subr.mxu0 0.0
        %597 = vmatpush1.xpose.msra.mxu0 0.0
        %598 = vmatprep.subr.mxu0 0.0
        %599 = vmatpush1.xpose.msra.mxu0 0.0
        %600 = vmatprep.subr.mxu0 0.0
        %601 = vmatpush1.xpose.msra.mxu0 0.0
        %602 = vmatprep.subr.mxu0 0.0
        %603 = vmatpush1.xpose.msra.mxu0 0.0
        %604 = vmatprep.subr.mxu0 0.0
        %605 = vmatpush1.xpose.msra.mxu0 0.0
        %606 = vmatprep.subr.mxu0 0.0
        %607 = vmatpush1.xpose.msra.mxu0 0.0
        %608 = vmatprep.subr.mxu0 0.0
        %609 = vmatpush1.xpose.msra.mxu0 0.0
        %610 = vmatprep.subr.mxu0 0.0
        %611 = vmatpush1.xpose.msra.mxu0 0.0
        %612 = vmatprep.subr.mxu0 0.0
        %613 = vmatpush1.xpose.msra.mxu0 0.0
        %614 = vmatprep.subr.mxu0 0.0
        %615 = vmatpush1.xpose.msra.mxu0 0.0
        %616 = vmatprep.subr.mxu0 0.0
        %617 = vmatpush1.xpose.msra.mxu0 0.0
        %618 = vmatprep.subr.mxu0 0.0
        %619 = vmatpush1.xpose.msra.mxu0 0.0
        %620 = vmatprep.subr.mxu0 0.0
        %621 = vmatpush1.xpose.msra.mxu0 0.0
        %622 = vmatprep.subr.mxu0 0.0
        %623 = vmatpush1.xpose.msra.mxu0 0.0
        %624 = vmatprep.subr.mxu0 0.0
        %625 = vmatpush1.xpose.msra.mxu0 0.0
        %626 = vmatprep.subr.mxu0 0.0
        %627 = vmatpush1.xpose.msra.mxu0 0.0
        %628 = vmatprep.subr.mxu0 0.0
        %629 = vmatpush1.xpose.msra.mxu0 0.0
        %630 = vmatprep.subr.mxu0 0.0
        %631 = vmatpush1.xpose.msra.mxu0 0.0
        %632 = vmatprep.subr.mxu0 0.0
        %633 = vmatpush1.xpose.msra.mxu0 0.0
        %634 = vmatprep.subr.mxu0 0.0
        %635 = vmatpush1.xpose.msra.mxu0 0.0
        %636 = vmatprep.subr.mxu0 0.0
        %637 = vmatpush1.xpose.msra.mxu0 0.0
        %638 = vmatprep.subr.mxu0 0.0
        %639 = vmatpush1.xpose.msra.mxu0 0.0
        %640 = vmatprep.subr.mxu0 0.0
        %641 = vmatpush1.xpose.msra.mxu0 0.0
        %642 = vmatprep.subr.mxu0 0.0
        %643 = vmatpush1.xpose.msra.mxu0 0.0
        %644 = vmatprep.subr.mxu0 0.0
        %645 = vmatpush1.xpose.msra.mxu0 0.0
        %646 = vmatprep.subr.mxu0 0.0
        %647 = vmatpush1.xpose.msra.mxu0 0.0
        %648 = vmatprep.subr.mxu0 0.0
        %649 = vmatpush1.xpose.msra.mxu0 0.0
        %650 = vmatprep.subr.mxu0 0.0
        %651 = vmatpush1.xpose.msra.mxu0 0.0
        %652 = vmatprep.mubr.f32.mxu0 0.0
        %653 = vmatmul.mubr.f32.gmra.mrb[0].mxu0 %v584
        %v654 = vpop.f32.mrb[0].mxu0
        %v655 = vadd.f32 %v575, %v654
        %v656 = vpop.f32.mrb[0].mxu0
        %657 = vdwg.mxu0
        %v658 = vsel %vm583, %v655, -inf
        %659 = vmax.xlane.f32.xlu0 %v658
        %v660 = vpop.xlane.xlu0 %659
        %v661 = vsub.f32 %v655, %v660
        %v662 = vmul.f32 %v661, 1.442695
        %v663 = vpow.pop %v662
        %v664 = vsel %vm583, %v663, 0.0
        %665 = vadd.xlane.f32.xlu0 %v664
        %v666 = vpop.xlane.xlu0 %665
        %v667 = vrcp.pop %v666
        %v668 = vmul.f32 %v663, %v667
        %669 = vrot.lane.b32.xlu0 %v482, 80
        %v670 = vpop.permute.xlu0 %669
        %v673 = vsel %vm583, %v668, 0
        %675 = vmatprep.subr.mxu0 0.0
        %676 = vmatpush1.msra.mxu0 %v670
        %677 = vmatprep.subr.mxu0 0.0
        %678 = vmatpush1.msra.mxu0 0.0
        %679 = vmatprep.subr.mxu0 0.0
        %680 = vmatpush1.msra.mxu0 0.0
        %681 = vmatprep.subr.mxu0 0.0
        %682 = vmatpush1.msra.mxu0 0.0
        %683 = vmatprep.subr.mxu0 0.0
        %684 = vmatpush1.msra.mxu0 0.0
        %685 = vmatprep.subr.mxu0 0.0
        %686 = vmatpush1.msra.mxu0 0.0
        %687 = vmatprep.subr.mxu0 0.0
        %688 = vmatpush1.msra.mxu0 0.0
        %689 = vmatprep.subr.mxu0 0.0
        %690 = vmatpush1.msra.mxu0 0.0
        %691 = vmatprep.subr.mxu0 0.0
        %692 = vmatpush1.msra.mxu0 0.0
        %693 = vmatprep.subr.mxu0 0.0
        %694 = vmatpush1.msra.mxu0 0.0
        %695 = vmatprep.subr.mxu0 0.0
        %696 = vmatpush1.msra.mxu0 0.0
        %697 = vmatprep.subr.mxu0 0.0
        %698 = vmatpush1.msra.mxu0 0.0
        %699 = vmatprep.subr.mxu0 0.0
        %700 = vmatpush1.msra.mxu0 0.0
        %701 = vmatprep.subr.mxu0 0.0
        %702 = vmatpush1.msra.mxu0 0.0
        %703 = vmatprep.subr.mxu0 0.0
        %704 = vmatpush1.msra.mxu0 0.0
        %705 = vmatprep.subr.mxu0 0.0
        %706 = vmatpush1.msra.mxu0 0.0
        %707 = vmatprep.subr.mxu0 0.0
        %708 = vmatpush1.msra.mxu0 0.0
        %709 = vmatprep.subr.mxu0 0.0
        %710 = vmatpush1.msra.mxu0 0.0
        %711 = vmatprep.subr.mxu0 0.0
        %712 = vmatpush1.msra.mxu0 0.0
        %713 = vmatprep.subr.mxu0 0.0
        %714 = vmatpush1.msra.mxu0 0.0
        %715 = vmatprep.subr.mxu0 0.0
        %716 = vmatpush1.msra.mxu0 0.0
        %717 = vmatprep.subr.mxu0 0.0
        %718 = vmatpush1.msra.mxu0 0.0
        %719 = vmatprep.subr.mxu0 0.0
        %720 = vmatpush1.msra.mxu0 0.0
        %721 = vmatprep.subr.mxu0 0.0
        %722 = vmatpush1.msra.mxu0 0.0
        %723 = vmatprep.subr.mxu0 0.0
        %724 = vmatpush1.msra.mxu0 0.0
        %725 = vmatprep.subr.mxu0 0.0
        %726 = vmatpush1.msra.mxu0 0.0
        %727 = vmatprep.subr.mxu0 0.0
        %728 = vmatpush1.msra.mxu0 0.0
        %729 = vmatprep.subr.mxu0 0.0
        %730 = vmatpush1.msra.mxu0 0.0
        %731 = vmatprep.subr.mxu0 0.0
        %732 = vmatpush1.msra.mxu0 0.0
        %733 = vmatprep.subr.mxu0 0.0
        %734 = vmatpush1.msra.mxu0 0.0
        %735 = vmatprep.subr.mxu0 0.0
        %736 = vmatpush1.msra.mxu0 0.0
        %737 = vmatprep.subr.mxu0 0.0
        %738 = vmatpush1.msra.mxu0 0.0
        %739 = vmatprep.mubr.f32.mxu0 0.0
        %740 = vmatmul.mubr.f32.gmra.mrb[0].mxu0 %v673
        %v741 = vpop.f32.mrb[0].mxu0
        %v742 = vadd.f32 0.0, %v741
        %v743 = vpop.f32.mrb[0].mxu0
        %744 = vdwg.mxu0
        %v746 = vsel %vm583, %v742, 0
        %748 = vmatprep.subr.mxu0 0.0
        %749 = vmatpush1.msra.mxu0 %v576
        %750 = vmatprep.subr.mxu0 0.0
        %751 = vmatpush1.msra.mxu0 0.0
        %752 = vmatprep.subr.mxu0 0.0
        %753 = vmatpush1.msra.mxu0 0.0
        %754 = vmatprep.subr.mxu0 0.0
        %755 = vmatpush1.msra.mxu0 0.0
        %756 = vmatprep.subr.mxu0 0.0
        %757 = vmatpush1.msra.mxu0 0.0
        %758 = vmatprep.subr.mxu0 0.0
        %759 = vmatpush1.msra.mxu0 0.0
        %760 = vmatprep.subr.mxu0 0.0
        %761 = vmatpush1.msra.mxu0 0.0
        %762 = vmatprep.subr.mxu0 0.0
        %763 = vmatpush1.msra.mxu0 0.0
        %764 = vmatprep.subr.mxu0 0.0
        %765 = vmatpush1.msra.mxu0 0.0
        %766 = vmatprep.subr.mxu0 0.0
        %767 = vmatpush1.msra.mxu0 0.0
        %768 = vmatprep.subr.mxu0 0.0
        %769 = vmatpush1.msra.mxu0 0.0
        %770 = vmatprep.subr.mxu0 0.0
        %771 = vmatpush1.msra.mxu0 0.0
        %772 = vmatprep.subr.mxu0 0.0
        %773 = vmatpush1.msra.mxu0 0.0
        %774 = vmatprep.subr.mxu0 0.0
        %775 = vmatpush1.msra.mxu0 0.0
        %776 = vmatprep.subr.mxu0 0.0
        %777 = vmatpush1.msra.mxu0 0.0
        %778 = vmatprep.subr.mxu0 0.0
        %779 = vmatpush1.msra.mxu0 0.0
        %780 = vmatprep.subr.mxu0 0.0
        %781 = vmatpush1.msra.mxu0 0.0
        %782 = vmatprep.subr.mxu0 0.0
        %783 = vmatpush1.msra.mxu0 0.0
        %784 = vmatprep.subr.mxu0 0.0
        %785 = vmatpush1.msra.mxu0 0.0
        %786 = vmatprep.subr.mxu0 0.0
        %787 = vmatpush1.msra.mxu0 0.0
        %788 = vmatprep.subr.mxu0 0.0
        %789 = vmatpush1.msra.mxu0 0.0
        %790 = vmatprep.subr.mxu0 0.0
        %791 = vmatpush1.msra.mxu0 0.0
        %792 = vmatprep.subr.mxu0 0.0
        %793 = vmatpush1.msra.mxu0 0.0
        %794 = vmatprep.subr.mxu0 0.0
        %795 = vmatpush1.msra.mxu0 0.0
        %796 = vmatprep.subr.mxu0 0.0
        %797 = vmatpush1.msra.mxu0 0.0
        %798 = vmatprep.subr.mxu0 0.0
        %799 = vmatpush1.msra.mxu0 0.0
        %800 = vmatprep.subr.mxu0 0.0
        %801 = vmatpush1.msra.mxu0 0.0
        %802 = vmatprep.subr.mxu0 0.0
        %803 = vmatpush1.msra.mxu0 0.0
        %804 = vmatprep.subr.mxu0 0.0
        %805 = vmatpush1.msra.mxu0 0.0
        %806 = vmatprep.subr.mxu0 0.0
        %807 = vmatpush1.msra.mxu0 0.0
        %808 = vmatprep.subr.mxu0 0.0
        %809 = vmatpush1.msra.mxu0 0.0
        %810 = vmatprep.subr.mxu0 0.0
        %811 = vmatpush1.msra.mxu0 0.0
        %812 = vmatprep.mubr.f32.mxu0 0.0
        %813 = vmatmul.mubr.f32.gmra.mrb[0].mxu0 %v746
        %v814 = vpop.f32.mrb[0].mxu0
        %v815 = vadd.f32 0.0, %v814
        %v816 = vpop.f32.mrb[0].mxu0
        %817 = vdwg.mxu0
        %v818 = vadd.f32 %v389, %v815
        %819 = vrot.lane.b32.xlu0 %v569, 120
        %v820 = vpop.permute.xlu0 %819
        %v821 = vsel %vm583, %v820, 0
        %823 = vmatprep.subr.mxu0 0.0
        %824 = vmatpush1.xpose.msra.mxu0 %v586
        %825 = vmatprep.subr.mxu0 0.0
        %826 = vmatpush1.xpose.msra.mxu0 0.0
        %827 = vmatprep.subr.mxu0 0.0
        %828 = vmatpush1.xpose.msra.mxu0 0.0
        %829 = vmatprep.subr.mxu0 0.0
        %830 = vmatpush1.xpose.msra.mxu0 0.0
        %831 = vmatprep.subr.mxu0 0.0
        %832 = vmatpush1.xpose.msra.mxu0 0.0
        %833 = vmatprep.subr.mxu0 0.0
        %834 = vmatpush1.xpose.msra.mxu0 0.0
        %835 = vmatprep.subr.mxu0 0.0
        %836 = vmatpush1.xpose.msra.mxu0 0.0
        %837 = vmatprep.subr.mxu0 0.0
        %838 = vmatpush1.xpose.msra.mxu0 0.0
        %839 = vmatprep.subr.mxu0 0.0
        %840 = vmatpush1.xpose.msra.mxu0 0.0
        %841 = vmatprep.subr.mxu0 0.0
        %842 = vmatpush1.xpose.msra.mxu0 0.0
        %843 = vmatprep.subr.mxu0 0.0
        %844 = vmatpush1.xpose.msra.mxu0 0.0
        %845 = vmatprep.subr.mxu0 0.0
        %846 = vmatpush1.xpose.msra.mxu0 0.0
        %847 = vmatprep.subr.mxu0 0.0
        %848 = vmatpush1.xpose.msra.mxu0 0.0
        %849 = vmatprep.subr.mxu0 0.0
        %850 = vmatpush1.xpose.msra.mxu0 0.0
        %851 = vmatprep.subr.mxu0 0.0
        %852 = vmatpush1.xpose.msra.mxu0 0.0
        %853 = vmatprep.subr.mxu0 0.0
        %854 = vmatpush1.xpose.msra.mxu0 0.0
        %855 = vmatprep.subr.mxu0 0.0
        %856 = vmatpush1.xpose.msra.mxu0 0.0
        %857 = vmatprep.subr.mxu0 0.0
        %858 = vmatpush1.xpose.msra.mxu0 0.0
        %859 = vmatprep.subr.mxu0 0.0
        %860 = vmatpush1.xpose.msra.mxu0 0.0
        %861 = vmatprep.subr.mxu0 0.0
        %862 = vmatpush1.xpose.msra.mxu0 0.0
        %863 = vmatprep.subr.mxu0 0.0
        %864 = vmatpush1.xpose.msra.mxu0 0.0
        %865 = vmatprep.subr.mxu0 0.0
        %866 = vmatpush1.xpose.msra.mxu0 0.0
        %867 = vmatprep.subr.mxu0 0.0
        %868 = vmatpush1.xpose.msra.mxu0 0.0
        %869 = vmatprep.subr.mxu0 0.0
        %870 = vmatpush1.xpose.msra.mxu0 0.0
        %871 = vmatprep.subr.mxu0 0.0
        %872 = vmatpush1.xpose.msra.mxu0 0.0
        %873 = vmatprep.subr.mxu0 0.0
        %874 = vmatpush1.xpose.msra.mxu0 0.0
        %875 = vmatprep.subr.mxu0 0.0
        %876 = vmatpush1.xpose.msra.mxu0 0.0
        %877 = vmatprep.subr.mxu0 0.0
        %878 = vmatpush1.xpose.msra.mxu0 0.0
        %879 = vmatprep.subr.mxu0 0.0
        %880 = vmatpush1.xpose.msra.mxu0 0.0
        %881 = vmatprep.subr.mxu0 0.0
        %882 = vmatpush1.xpose.msra.mxu0 0.0
        %883 = vmatprep.subr.mxu0 0.0
        %884 = vmatpush1.xpose.msra.mxu0 0.0
        %885 = vmatprep.subr.mxu0 0.0
        %886 = vmatpush1.xpose.msra.mxu0 0.0
        %887 = vmatprep.mubr.f32.mxu0 0.0
        %888 = vmatmul.mubr.f32.gmra.mrb[0].mxu0 %v821
        %v889 = vpop.f32.mrb[0].mxu0
        %v890 = vadd.f32 %v575, %v889
        %v891 = vpop.f32.mrb[0].mxu0
        %892 = vdwg.mxu0
        %v893 = vsel %vm583, %v890, -inf
        %894 = vmax.xlane.f32.xlu0 %v893
        %v895 = vpop.xlane.xlu0 %894
        %v896 = vsub.f32 %v890, %v895
        %v897 = vmul.f32 %v896, 1.442695
        %v898 = vpow.pop %v897
        %v899 = vsel %vm583, %v898, 0.0
        %900 = vadd.xlane.f32.xlu0 %v899
        %v901 = vpop.xlane.xlu0 %900
        %v902 = vrcp.pop %v901
        %v903 = vmul.f32 %v898, %v902
        %v905 = vsel %vm583, %v903, 0
        %907 = vmatprep.subr.mxu0 0.0
        %908 = vmatpush1.msra.mxu0 %v670
        %909 = vmatprep.subr.mxu0 0.0
        %910 = vmatpush1.msra.mxu0 0.0
        %911 = vmatprep.subr.mxu0 0.0
        %912 = vmatpush1.msra.mxu0 0.0
        %913 = vmatprep.subr.mxu0 0.0
        %914 = vmatpush1.msra.mxu0 0.0
        %915 = vmatprep.subr.mxu0 0.0
        %916 = vmatpush1.msra.mxu0 0.0
        %917 = vmatprep.subr.mxu0 0.0
        %918 = vmatpush1.msra.mxu0 0.0
        %919 = vmatprep.subr.mxu0 0.0
        %920 = vmatpush1.msra.mxu0 0.0
        %921 = vmatprep.subr.mxu0 0.0
        %922 = vmatpush1.msra.mxu0 0.0
        %923 = vmatprep.subr.mxu0 0.0
        %924 = vmatpush1.msra.mxu0 0.0
        %925 = vmatprep.subr.mxu0 0.0
        %926 = vmatpush1.msra.mxu0 0.0
        %927 = vmatprep.subr.mxu0 0.0
        %928 = vmatpush1.msra.mxu0 0.0
        %929 = vmatprep.subr.mxu0 0.0
        %930 = vmatpush1.msra.mxu0 0.0
        %931 = vmatprep.subr.mxu0 0.0
        %932 = vmatpush1.msra.mxu0 0.0
        %933 = vmatprep.subr.mxu0 0.0
        %934 = vmatpush1.msra.mxu0 0.0
        %935 = vmatprep.subr.mxu0 0.0
        %936 = vmatpush1.msra.mxu0 0.0
        %937 = vmatprep.subr.mxu0 0.0
        %938 = vmatpush1.msra.mxu0 0.0
        %939 = vmatprep.subr.mxu0 0.0
        %940 = vmatpush1.msra.mxu0 0.0
        %941 = vmatprep.subr.mxu0 0.0
        %942 = vmatpush1.msra.mxu0 0.0
        %943 = vmatprep.subr.mxu0 0.0
        %944 = vmatpush1.msra.mxu0 0.0
        %945 = vmatprep.subr.mxu0 0.0
        %946 = vmatpush1.msra.mxu0 0.0
        %947 = vmatprep.subr.mxu0 0.0
        %948 = vmatpush1.msra.mxu0 0.0
        %949 = vmatprep.subr.mxu0 0.0
        %950 = vmatpush1.msra.mxu0 0.0
        %951 = vmatprep.subr.mxu0 0.0
        %952 = vmatpush1.msra.mxu0 0.0
        %953 = vmatprep.subr.mxu0 0.0
        %954 = vmatpush1.msra.mxu0 0.0
        %955 = vmatprep.subr.mxu0 0.0
        %956 = vmatpush1.msra.mxu0 0.0
        %957 = vmatprep.subr.mxu0 0.0
        %958 = vmatpush1.msra.mxu0 0.0
        %959 = vmatprep.subr.mxu0 0.0
        %960 = vmatpush1.msra.mxu0 0.0
        %961 = vmatprep.subr.mxu0 0.0
        %962 = vmatpush1.msra.mxu0 0.0
        %963 = vmatprep.subr.mxu0 0.0
        %964 = vmatpush1.msra.mxu0 0.0
        %965 = vmatprep.subr.mxu0 0.0
        %966 = vmatpush1.msra.mxu0 0.0
        %967 = vmatprep.subr.mxu0 0.0
        %968 = vmatpush1.msra.mxu0 0.0
        %969 = vmatprep.subr.mxu0 0.0
        %970 = vmatpush1.msra.mxu0 0.0
        %971 = vmatprep.mubr.f32.mxu0 0.0
        %972 = vmatmul.mubr.f32.gmra.mrb[0].mxu0 %v905
        %v973 = vpop.f32.mrb[0].mxu0
        %v974 = vadd.f32 0.0, %v973
        %v975 = vpop.f32.mrb[0].mxu0
        %976 = vdwg.mxu0
        %v978 = vsel %vm583, %v974, 0
        %980 = vmatprep.subr.mxu0 0.0
        %981 = vmatpush1.msra.mxu0 %v577
        %982 = vmatprep.subr.mxu0 0.0
        %983 = vmatpush1.msra.mxu0 0.0
        %984 = vmatprep.subr.mxu0 0.0
        %985 = vmatpush1.msra.mxu0 0.0
        %986 = vmatprep.subr.mxu0 0.0
        %987 = vmatpush1.msra.mxu0 0.0
        %988 = vmatprep.subr.mxu0 0.0
        %989 = vmatpush1.msra.mxu0 0.0
        %990 = vmatprep.subr.mxu0 0.0
        %991 = vmatpush1.msra.mxu0 0.0
        %992 = vmatprep.subr.mxu0 0.0
        %993 = vmatpush1.msra.mxu0 0.0
        %994 = vmatprep.subr.mxu0 0.0
        %995 = vmatpush1.msra.mxu0 0.0
        %996 = vmatprep.subr.mxu0 0.0
        %997 = vmatpush1.msra.mxu0 0.0
        %998 = vmatprep.subr.mxu0 0.0
        %999 = vmatpush1.msra.mxu0 0.0
        %1000 = vmatprep.subr.mxu0 0.0
        %1001 = vmatpush1.msra.mxu0 0.0
        %1002 = vmatprep.subr.mxu0 0.0
        %1003 = vmatpush1.msra.mxu0 0.0
        %1004 = vmatprep.subr.mxu0 0.0
        %1005 = vmatpush1.msra.mxu0 0.0
        %1006 = vmatprep.subr.mxu0 0.0
        %1007 = vmatpush1.msra.mxu0 0.0
        %1008 = vmatprep.subr.mxu0 0.0
        %1009 = vmatpush1.msra.mxu0 0.0
        %1010 = vmatprep.subr.mxu0 0.0
        %1011 = vmatpush1.msra.mxu0 0.0
        %1012 = vmatprep.subr.mxu0 0.0
        %1013 = vmatpush1.msra.mxu0 0.0
        %1014 = vmatprep.subr.mxu0 0.0
        %1015 = vmatpush1.msra.mxu0 0.0
        %1016 = vmatprep.subr.mxu0 0.0
        %1017 = vmatpush1.msra.mxu0 0.0
        %1018 = vmatprep.subr.mxu0 0.0
        %1019 = vmatpush1.msra.mxu0 0.0
        %1020 = vmatprep.subr.mxu0 0.0
        %1021 = vmatpush1.msra.mxu0 0.0
        %1022 = vmatprep.subr.mxu0 0.0
        %1023 = vmatpush1.msra.mxu0 0.0
        %1024 = vmatprep.subr.mxu0 0.0
        %1025 = vmatpush1.msra.mxu0 0.0
        %1026 = vmatprep.subr.mxu0 0.0
        %1027 = vmatpush1.msra.mxu0 0.0
        %1028 = vmatprep.subr.mxu0 0.0
        %1029 = vmatpush1.msra.mxu0 0.0
        %1030 = vmatprep.subr.mxu0 0.0
        %1031 = vmatpush1.msra.mxu0 0.0
        %1032 = vmatprep.subr.mxu0 0.0
        %1033 = vmatpush1.msra.mxu0 0.0
        %1034 = vmatprep.subr.mxu0 0.0
        %1035 = vmatpush1.msra.mxu0 0.0
        %1036 = vmatprep.subr.mxu0 0.0
        %1037 = vmatpush1.msra.mxu0 0.0
        %1038 = vmatprep.subr.mxu0 0.0
        %1039 = vmatpush1.msra.mxu0 0.0
        %1040 = vmatprep.subr.mxu0 0.0
        %1041 = vmatpush1.msra.mxu0 0.0
        %1042 = vmatprep.subr.mxu0 0.0
        %1043 = vmatpush1.msra.mxu0 0.0
        %1044 = vmatprep.mubr.f32.mxu0 0.0
        %1045 = vmatmul.mubr.f32.gmra.mrb[0].mxu0 %v978
        %v1046 = vpop.f32.mrb[0].mxu0
        %v1047 = vadd.f32 0.0, %v1046
        %v1048 = vpop.f32.mrb[0].mxu0
        %1049 = vdwg.mxu0
        %v1050 = vadd.f32 %v818, %v1047
        %1051 = vrot.lane.b32.xlu0 %v569, 112
        %v1052 = vpop.permute.xlu0 %1051
        %1053 = vrot.lane.b32.xlu0 %v569, 88
        %v1054 = vpop.permute.xlu0 %1053
        %v1055 = vsel %vm583, %v1052, 0
        %v1057 = vsel %vm583, %v1054, 0
        %1059 = vmatprep.subr.mxu0 0.0
        %1060 = vmatpush1.xpose.msra.mxu0 %v1057
        %1061 = vmatprep.subr.mxu0 0.0
        %1062 = vmatpush1.xpose.msra.mxu0 0.0
        %1063 = vmatprep.subr.mxu0 0.0
        %1064 = vmatpush1.xpose.msra.mxu0 0.0
        %1065 = vmatprep.subr.mxu0 0.0
        %1066 = vmatpush1.xpose.msra.mxu0 0.0
        %1067 = vmatprep.subr.mxu0 0.0
        %1068 = vmatpush1.xpose.msra.mxu0 0.0
        %1069 = vmatprep.subr.mxu0 0.0
        %1070 = vmatpush1.xpose.msra.mxu0 0.0
        %1071 = vmatprep.subr.mxu0 0.0
        %1072 = vmatpush1.xpose.msra.mxu0 0.0
        %1073 = vmatprep.subr.mxu0 0.0
        %1074 = vmatpush1.xpose.msra.mxu0 0.0
        %1075 = vmatprep.subr.mxu0 0.0
        %1076 = vmatpush1.xpose.msra.mxu0 0.0
        %1077 = vmatprep.subr.mxu0 0.0
        %1078 = vmatpush1.xpose.msra.mxu0 0.0
        %1079 = vmatprep.subr.mxu0 0.0
        %1080 = vmatpush1.xpose.msra.mxu0 0.0
        %1081 = vmatprep.subr.mxu0 0.0
        %1082 = vmatpush1.xpose.msra.mxu0 0.0
        %1083 = vmatprep.subr.mxu0 0.0
        %1084 = vmatpush1.xpose.msra.mxu0 0.0
        %1085 = vmatprep.subr.mxu0 0.0
        %1086 = vmatpush1.xpose.msra.mxu0 0.0
        %1087 = vmatprep.subr.mxu0 0.0
        %1088 = vmatpush1.xpose.msra.mxu0 0.0
        %1089 = vmatprep.subr.mxu0 0.0
        %1090 = vmatpush1.xpose.msra.mxu0 0.0
        %1091 = vmatprep.subr.mxu0 0.0
        %1092 = vmatpush1.xpose.msra.mxu0 0.0
        %1093 = vmatprep.subr.mxu0 0.0
        %1094 = vmatpush1.xpose.msra.mxu0 0.0
        %1095 = vmatprep.subr.mxu0 0.0
        %1096 = vmatpush1.xpose.msra.mxu0 0.0
        %1097 = vmatprep.subr.mxu0 0.0
        %1098 = vmatpush1.xpose.msra.mxu0 0.0
        %1099 = vmatprep.subr.mxu0 0.0
        %1100 = vmatpush1.xpose.msra.mxu0 0.0
        %1101 = vmatprep.subr.mxu0 0.0
        %1102 = vmatpush1.xpose.msra.mxu0 0.0
        %1103 = vmatprep.subr.mxu0 0.0
        %1104 = vmatpush1.xpose.msra.mxu0 0.0
        %1105 = vmatprep.subr.mxu0 0.0
        %1106 = vmatpush1.xpose.msra.mxu0 0.0
        %1107 = vmatprep.subr.mxu0 0.0
        %1108 = vmatpush1.xpose.msra.mxu0 0.0
        %1109 = vmatprep.subr.mxu0 0.0
        %1110 = vmatpush1.xpose.msra.mxu0 0.0
        %1111 = vmatprep.subr.mxu0 0.0
        %1112 = vmatpush1.xpose.msra.mxu0 0.0
        %1113 = vmatprep.subr.mxu0 0.0
        %1114 = vmatpush1.xpose.msra.mxu0 0.0
        %1115 = vmatprep.subr.mxu0 0.0
        %1116 = vmatpush1.xpose.msra.mxu0 0.0
        %1117 = vmatprep.subr.mxu0 0.0
        %1118 = vmatpush1.xpose.msra.mxu0 0.0
        %1119 = vmatprep.subr.mxu0 0.0
        %1120 = vmatpush1.xpose.msra.mxu0 0.0
        %1121 = vmatprep.subr.mxu0 0.0
        %1122 = vmatpush1.xpose.msra.mxu0 0.0
        %1123 = vmatprep.mubr.f32.mxu0 0.0
        %1124 = vmatmul.mubr.f32.gmra.mrb[0].mxu0 %v1055
        %v1125 = vpop.f32.mrb[0].mxu0
        %v1126 = vadd.f32 %v575, %v1125
        %v1127 = vpop.f32.mrb[0].mxu0
        %1128 = vdwg.mxu0
        %v1129 = vsel %vm583, %v1126, -inf
        %1130 = vmax.xlane.f32.xlu0 %v1129
        %v1131 = vpop.xlane.xlu0 %1130
        %v1132 = vsub.f32 %v1126, %v1131
        %v1133 = vmul.f32 %v1132, 1.442695
        %v1134 = vpow.pop %v1133
        %v1135 = vsel %vm583, %v1134, 0.0
        %1136 = vadd.xlane.f32.xlu0 %v1135
        %v1137 = vpop.xlane.xlu0 %1136
        %v1138 = vrcp.pop %v1137
        %v1139 = vmul.f32 %v1134, %v1138
        %1140 = vrot.lane.b32.xlu0 %v482, 72
        %v1141 = vpop.permute.xlu0 %1140
        %v1144 = vsel %vm583, %v1139, 0
        %1146 = vmatprep.subr.mxu0 0.0
        %1147 = vmatpush1.msra.mxu0 %v1141
        %1148 = vmatprep.subr.mxu0 0.0
        %1149 = vmatpush1.msra.mxu0 0.0
        %1150 = vmatprep.subr.mxu0 0.0
        %1151 = vmatpush1.msra.mxu0 0.0
        %1152 = vmatprep.subr.mxu0 0.0
        %1153 = vmatpush1.msra.mxu0 0.0
        %1154 = vmatprep.subr.mxu0 0.0
        %1155 = vmatpush1.msra.mxu0 0.0
        %1156 = vmatprep.subr.mxu0 0.0
        %1157 = vmatpush1.msra.mxu0 0.0
        %1158 = vmatprep.subr.mxu0 0.0
        %1159 = vmatpush1.msra.mxu0 0.0
        %1160 = vmatprep.subr.mxu0 0.0
        %1161 = vmatpush1.msra.mxu0 0.0
        %1162 = vmatprep.subr.mxu0 0.0
        %1163 = vmatpush1.msra.mxu0 0.0
        %1164 = vmatprep.subr.mxu0 0.0
        %1165 = vmatpush1.msra.mxu0 0.0
        %1166 = vmatprep.subr.mxu0 0.0
        %1167 = vmatpush1.msra.mxu0 0.0
        %1168 = vmatprep.subr.mxu0 0.0
        %1169 = vmatpush1.msra.mxu0 0.0
        %1170 = vmatprep.subr.mxu0 0.0
        %1171 = vmatpush1.msra.mxu0 0.0
        %1172 = vmatprep.subr.mxu0 0.0
        %1173 = vmatpush1.msra.mxu0 0.0
        %1174 = vmatprep.subr.mxu0 0.0
        %1175 = vmatpush1.msra.mxu0 0.0
        %1176 = vmatprep.subr.mxu0 0.0
        %1177 = vmatpush1.msra.mxu0 0.0
        %1178 = vmatprep.subr.mxu0 0.0
        %1179 = vmatpush1.msra.mxu0 0.0
        %1180 = vmatprep.subr.mxu0 0.0
        %1181 = vmatpush1.msra.mxu0 0.0
        %1182 = vmatprep.subr.mxu0 0.0
        %1183 = vmatpush1.msra.mxu0 0.0
        %1184 = vmatprep.subr.mxu0 0.0
        %1185 = vmatpush1.msra.mxu0 0.0
        %1186 = vmatprep.subr.mxu0 0.0
        %1187 = vmatpush1.msra.mxu0 0.0
        %1188 = vmatprep.subr.mxu0 0.0
        %1189 = vmatpush1.msra.mxu0 0.0
        %1190 = vmatprep.subr.mxu0 0.0
        %1191 = vmatpush1.msra.mxu0 0.0
        %1192 = vmatprep.subr.mxu0 0.0
        %1193 = vmatpush1.msra.mxu0 0.0
        %1194 = vmatprep.subr.mxu0 0.0
        %1195 = vmatpush1.msra.mxu0 0.0
        %1196 = vmatprep.subr.mxu0 0.0
        %1197 = vmatpush1.msra.mxu0 0.0
        %1198 = vmatprep.subr.mxu0 0.0
        %1199 = vmatpush1.msra.mxu0 0.0
        %1200 = vmatprep.subr.mxu0 0.0
        %1201 = vmatpush1.msra.mxu0 0.0
        %1202 = vmatprep.subr.mxu0 0.0
        %1203 = vmatpush1.msra.mxu0 0.0
        %1204 = vmatprep.subr.mxu0 0.0
        %1205 = vmatpush1.msra.mxu0 0.0
        %1206 = vmatprep.subr.mxu0 0.0
        %1207 = vmatpush1.msra.mxu0 0.0
        %1208 = vmatprep.subr.mxu0 0.0
        %1209 = vmatpush1.msra.mxu0 0.0
        %1210 = vmatprep.mubr.f32.mxu0 0.0
        %1211 = vmatmul.mubr.f32.gmra.mrb[0].mxu0 %v1144
        %v1212 = vpop.f32.mrb[0].mxu0
        %v1213 = vadd.f32 0.0, %v1212
        %v1214 = vpop.f32.mrb[0].mxu0
        %1215 = vdwg.mxu0
        %v1217 = vsel %vm583, %v1213, 0
        %1219 = vmatprep.subr.mxu0 0.0
        %1220 = vmatpush1.msra.mxu0 %v578
        %1221 = vmatprep.subr.mxu0 0.0
        %1222 = vmatpush1.msra.mxu0 0.0
        %1223 = vmatprep.subr.mxu0 0.0
        %1224 = vmatpush1.msra.mxu0 0.0
        %1225 = vmatprep.subr.mxu0 0.0
        %1226 = vmatpush1.msra.mxu0 0.0
        %1227 = vmatprep.subr.mxu0 0.0
        %1228 = vmatpush1.msra.mxu0 0.0
        %1229 = vmatprep.subr.mxu0 0.0
        %1230 = vmatpush1.msra.mxu0 0.0
        %1231 = vmatprep.subr.mxu0 0.0
        %1232 = vmatpush1.msra.mxu0 0.0
        %1233 = vmatprep.subr.mxu0 0.0
        %1234 = vmatpush1.msra.mxu0 0.0
        %1235 = vmatprep.subr.mxu0 0.0
        %1236 = vmatpush1.msra.mxu0 0.0
        %1237 = vmatprep.subr.mxu0 0.0
        %1238 = vmatpush1.msra.mxu0 0.0
        %1239 = vmatprep.subr.mxu0 0.0
        %1240 = vmatpush1.msra.mxu0 0.0
        %1241 = vmatprep.subr.mxu0 0.0
        %1242 = vmatpush1.msra.mxu0 0.0
        %1243 = vmatprep.subr.mxu0 0.0
        %1244 = vmatpush1.msra.mxu0 0.0
        %1245 = vmatprep.subr.mxu0 0.0
        %1246 = vmatpush1.msra.mxu0 0.0
        %1247 = vmatprep.subr.mxu0 0.0
        %1248 = vmatpush1.msra.mxu0 0.0
        %1249 = vmatprep.subr.mxu0 0.0
        %1250 = vmatpush1.msra.mxu0 0.0
        %1251 = vmatprep.subr.mxu0 0.0
        %1252 = vmatpush1.msra.mxu0 0.0
        %1253 = vmatprep.subr.mxu0 0.0
        %1254 = vmatpush1.msra.mxu0 0.0
        %1255 = vmatprep.subr.mxu0 0.0
        %1256 = vmatpush1.msra.mxu0 0.0
        %1257 = vmatprep.subr.mxu0 0.0
        %1258 = vmatpush1.msra.mxu0 0.0
        %1259 = vmatprep.subr.mxu0 0.0
        %1260 = vmatpush1.msra.mxu0 0.0
        %1261 = vmatprep.subr.mxu0 0.0
        %1262 = vmatpush1.msra.mxu0 0.0
        %1263 = vmatprep.subr.mxu0 0.0
        %1264 = vmatpush1.msra.mxu0 0.0
        %1265 = vmatprep.subr.mxu0 0.0
        %1266 = vmatpush1.msra.mxu0 0.0
        %1267 = vmatprep.subr.mxu0 0.0
        %1268 = vmatpush1.msra.mxu0 0.0
        %1269 = vmatprep.subr.mxu0 0.0
        %1270 = vmatpush1.msra.mxu0 0.0
        %1271 = vmatprep.subr.mxu0 0.0
        %1272 = vmatpush1.msra.mxu0 0.0
        %1273 = vmatprep.subr.mxu0 0.0
        %1274 = vmatpush1.msra.mxu0 0.0
        %1275 = vmatprep.subr.mxu0 0.0
        %1276 = vmatpush1.msra.mxu0 0.0
        %1277 = vmatprep.subr.mxu0 0.0
        %1278 = vmatpush1.msra.mxu0 0.0
        %1279 = vmatprep.subr.mxu0 0.0
        %1280 = vmatpush1.msra.mxu0 0.0
        %1281 = vmatprep.subr.mxu0 0.0
        %1282 = vmatpush1.msra.mxu0 0.0
        %1283 = vmatprep.mubr.f32.mxu0 0.0
        %1284 = vmatmul.mubr.f32.gmra.mrb[0].mxu0 %v1217
        %v1285 = vpop.f32.mrb[0].mxu0
        %v1286 = vadd.f32 0.0, %v1285
        %v1287 = vpop.f32.mrb[0].mxu0
        %1288 = vdwg.mxu0
        %v1289 = vadd.f32 %v1050, %v1286
        %1290 = vrot.lane.b32.xlu0 %v569, 104
        %v1291 = vpop.permute.xlu0 %1290
        %v1292 = vsel %vm583, %v1291, 0
        %1294 = vmatprep.subr.mxu0 0.0
        %1295 = vmatpush1.xpose.msra.mxu0 %v1057
        %1296 = vmatprep.subr.mxu0 0.0
        %1297 = vmatpush1.xpose.msra.mxu0 0.0
        %1298 = vmatprep.subr.mxu0 0.0
        %1299 = vmatpush1.xpose.msra.mxu0 0.0
        %1300 = vmatprep.subr.mxu0 0.0
        %1301 = vmatpush1.xpose.msra.mxu0 0.0
        %1302 = vmatprep.subr.mxu0 0.0
        %1303 = vmatpush1.xpose.msra.mxu0 0.0
        %1304 = vmatprep.subr.mxu0 0.0
        %1305 = vmatpush1.xpose.msra.mxu0 0.0
        %1306 = vmatprep.subr.mxu0 0.0
        %1307 = vmatpush1.xpose.msra.mxu0 0.0
        %1308 = vmatprep.subr.mxu0 0.0
        %1309 = vmatpush1.xpose.msra.mxu0 0.0
        %1310 = vmatprep.subr.mxu0 0.0
        %1311 = vmatpush1.xpose.msra.mxu0 0.0
        %1312 = vmatprep.subr.mxu0 0.0
        %1313 = vmatpush1.xpose.msra.mxu0 0.0
        %1314 = vmatprep.subr.mxu0 0.0
        %1315 = vmatpush1.xpose.msra.mxu0 0.0
        %1316 = vmatprep.subr.mxu0 0.0
        %1317 = vmatpush1.xpose.msra.mxu0 0.0
        %1318 = vmatprep.subr.mxu0 0.0
        %1319 = vmatpush1.xpose.msra.mxu0 0.0
        %1320 = vmatprep.subr.mxu0 0.0
        %1321 = vmatpush1.xpose.msra.mxu0 0.0
        %1322 = vmatprep.subr.mxu0 0.0
        %1323 = vmatpush1.xpose.msra.mxu0 0.0
        %1324 = vmatprep.subr.mxu0 0.0
        %1325 = vmatpush1.xpose.msra.mxu0 0.0
        %1326 = vmatprep.subr.mxu0 0.0
        %1327 = vmatpush1.xpose.msra.mxu0 0.0
        %1328 = vmatprep.subr.mxu0 0.0
        %1329 = vmatpush1.xpose.msra.mxu0 0.0
        %1330 = vmatprep.subr.mxu0 0.0
        %1331 = vmatpush1.xpose.msra.mxu0 0.0
        %1332 = vmatprep.subr.mxu0 0.0
        %1333 = vmatpush1.xpose.msra.mxu0 0.0
        %1334 = vmatprep.subr.mxu0 0.0
        %1335 = vmatpush1.xpose.msra.mxu0 0.0
        %1336 = vmatprep.subr.mxu0 0.0
        %1337 = vmatpush1.xpose.msra.mxu0 0.0
        %1338 = vmatprep.subr.mxu0 0.0
        %1339 = vmatpush1.xpose.msra.mxu0 0.0
        %1340 = vmatprep.subr.mxu0 0.0
        %1341 = vmatpush1.xpose.msra.mxu0 0.0
        %1342 = vmatprep.subr.mxu0 0.0
        %1343 = vmatpush1.xpose.msra.mxu0 0.0
        %1344 = vmatprep.subr.mxu0 0.0
        %1345 = vmatpush1.xpose.msra.mxu0 0.0
        %1346 = vmatprep.subr.mxu0 0.0
        %1347 = vmatpush1.xpose.msra.mxu0 0.0
        %1348 = vmatprep.subr.mxu0 0.0
        %1349 = vmatpush1.xpose.msra.mxu0 0.0
        %1350 = vmatprep.subr.mxu0 0.0
        %1351 = vmatpush1.xpose.msra.mxu0 0.0
        %1352 = vmatprep.subr.mxu0 0.0
        %1353 = vmatpush1.xpose.msra.mxu0 0.0
        %1354 = vmatprep.subr.mxu0 0.0
        %1355 = vmatpush1.xpose.msra.mxu0 0.0
        %1356 = vmatprep.subr.mxu0 0.0
        %1357 = vmatpush1.xpose.msra.mxu0 0.0
        %1358 = vmatprep.mubr.f32.mxu0 0.0
        %1359 = vmatmul.mubr.f32.gmra.mrb[0].mxu0 %v1292
        %v1360 = vpop.f32.mrb[0].mxu0
        %v1361 = vadd.f32 %v575, %v1360
        %v1362 = vpop.f32.mrb[0].mxu0
        %1363 = vdwg.mxu0
        %v1364 = vsel %vm583, %v1361, -inf
        %1365 = vmax.xlane.f32.xlu0 %v1364
        %v1366 = vpop.xlane.xlu0 %1365
        %v1367 = vsub.f32 %v1361, %v1366
        %v1368 = vmul.f32 %v1367, 1.442695
        %v1369 = vpow.pop %v1368
        %v1370 = vsel %vm583, %v1369, 0.0
        %1371 = vadd.xlane.f32.xlu0 %v1370
        %v1372 = vpop.xlane.xlu0 %1371
        %v1373 = vrcp.pop %v1372
        %v1374 = vmul.f32 %v1369, %v1373
        %v1376 = vsel %vm583, %v1374, 0
        %1378 = vmatprep.subr.mxu0 0.0
        %1379 = vmatpush1.msra.mxu0 %v1141
        %1380 = vmatprep.subr.mxu0 0.0
        %1381 = vmatpush1.msra.mxu0 0.0
        %1382 = vmatprep.subr.mxu0 0.0
        %1383 = vmatpush1.msra.mxu0 0.0
        %1384 = vmatprep.subr.mxu0 0.0
        %1385 = vmatpush1.msra.mxu0 0.0
        %1386 = vmatprep.subr.mxu0 0.0
        %1387 = vmatpush1.msra.mxu0 0.0
        %1388 = vmatprep.subr.mxu0 0.0
        %1389 = vmatpush1.msra.mxu0 0.0
        %1390 = vmatprep.subr.mxu0 0.0
        %1391 = vmatpush1.msra.mxu0 0.0
        %1392 = vmatprep.subr.mxu0 0.0
        %1393 = vmatpush1.msra.mxu0 0.0
        %1394 = vmatprep.subr.mxu0 0.0
        %1395 = vmatpush1.msra.mxu0 0.0
        %1396 = vmatprep.subr.mxu0 0.0
        %1397 = vmatpush1.msra.mxu0 0.0
        %1398 = vmatprep.subr.mxu0 0.0
        %1399 = vmatpush1.msra.mxu0 0.0
        %1400 = vmatprep.subr.mxu0 0.0
        %1401 = vmatpush1.msra.mxu0 0.0
        %1402 = vmatprep.subr.mxu0 0.0
        %1403 = vmatpush1.msra.mxu0 0.0
        %1404 = vmatprep.subr.mxu0 0.0
        %1405 = vmatpush1.msra.mxu0 0.0
        %1406 = vmatprep.subr.mxu0 0.0
        %1407 = vmatpush1.msra.mxu0 0.0
        %1408 = vmatprep.subr.mxu0 0.0
        %1409 = vmatpush1.msra.mxu0 0.0
        %1410 = vmatprep.subr.mxu0 0.0
        %1411 = vmatpush1.msra.mxu0 0.0
        %1412 = vmatprep.subr.mxu0 0.0
        %1413 = vmatpush1.msra.mxu0 0.0
        %1414 = vmatprep.subr.mxu0 0.0
        %1415 = vmatpush1.msra.mxu0 0.0
        %1416 = vmatprep.subr.mxu0 0.0
        %1417 = vmatpush1.msra.mxu0 0.0
        %1418 = vmatprep.subr.mxu0 0.0
        %1419 = vmatpush1.msra.mxu0 0.0
        %1420 = vmatprep.subr.mxu0 0.0
        %1421 = vmatpush1.msra.mxu0 0.0
        %1422 = vmatprep.subr.mxu0 0.0
        %1423 = vmatpush1.msra.mxu0 0.0
        %1424 = vmatprep.subr.mxu0 0.0
        %1425 = vmatpush1.msra.mxu0 0.0
        %1426 = vmatprep.subr.mxu0 0.0
        %1427 = vmatpush1.msra.mxu0 0.0
        %1428 = vmatprep.subr.mxu0 0.0
        %1429 = vmatpush1.msra.mxu0 0.0
        %1430 = vmatprep.subr.mxu0 0.0
        %1431 = vmatpush1.msra.mxu0 0.0
        %1432 = vmatprep.subr.mxu0 0.0
        %1433 = vmatpush1.msra.mxu0 0.0
        %1434 = vmatprep.subr.mxu0 0.0
        %1435 = vmatpush1.msra.mxu0 0.0
        %1436 = vmatprep.subr.mxu0 0.0
        %1437 = vmatpush1.msra.mxu0 0.0
        %1438 = vmatprep.subr.mxu0 0.0
        %1439 = vmatpush1.msra.mxu0 0.0
        %1440 = vmatprep.subr.mxu0 0.0
        %1441 = vmatpush1.msra.mxu0 0.0
        %1442 = vmatprep.mubr.f32.mxu0 0.0
        %1443 = vmatmul.mubr.f32.gmra.mrb[0].mxu0 %v1376
        %v1444 = vpop.f32.mrb[0].mxu0
        %v1445 = vadd.f32 0.0, %v1444
        %v1446 = vpop.f32.mrb[0].mxu0
        %1447 = vdwg.mxu0
        %v1449 = vsel %vm583, %v1445, 0
        %1451 = vmatprep.subr.mxu0 0.0
        %1452 = vmatpush1.msra.mxu0 %v579
        %1453 = vmatprep.subr.mxu0 0.0
        %1454 = vmatpush1.msra.mxu0 0.0
        %1455 = vmatprep.subr.mxu0 0.0
        %1456 = vmatpush1.msra.mxu0 0.0
        %1457 = vmatprep.subr.mxu0 0.0
        %1458 = vmatpush1.msra.mxu0 0.0
        %1459 = vmatprep.subr.mxu0 0.0
        %1460 = vmatpush1.msra.mxu0 0.0
        %1461 = vmatprep.subr.mxu0 0.0
        %1462 = vmatpush1.msra.mxu0 0.0
        %1463 = vmatprep.subr.mxu0 0.0
        %1464 = vmatpush1.msra.mxu0 0.0
        %1465 = vmatprep.subr.mxu0 0.0
        %1466 = vmatpush1.msra.mxu0 0.0
        %1467 = vmatprep.subr.mxu0 0.0
        %1468 = vmatpush1.msra.mxu0 0.0
        %1469 = vmatprep.subr.mxu0 0.0
        %1470 = vmatpush1.msra.mxu0 0.0
        %1471 = vmatprep.subr.mxu0 0.0
        %1472 = vmatpush1.msra.mxu0 0.0
        %1473 = vmatprep.subr.mxu0 0.0
        %1474 = vmatpush1.msra.mxu0 0.0
        %1475 = vmatprep.subr.mxu0 0.0
        %1476 = vmatpush1.msra.mxu0 0.0
        %1477 = vmatprep.subr.mxu0 0.0
        %1478 = vmatpush1.msra.mxu0 0.0
        %1479 = vmatprep.subr.mxu0 0.0
        %1480 = vmatpush1.msra.mxu0 0.0
        %1481 = vmatprep.subr.mxu0 0.0
        %1482 = vmatpush1.msra.mxu0 0.0
        %1483 = vmatprep.subr.mxu0 0.0
        %1484 = vmatpush1.msra.mxu0 0.0
        %1485 = vmatprep.subr.mxu0 0.0
        %1486 = vmatpush1.msra.mxu0 0.0
        %1487 = vmatprep.subr.mxu0 0.0
        %1488 = vmatpush1.msra.mxu0 0.0
        %1489 = vmatprep.subr.mxu0 0.0
        %1490 = vmatpush1.msra.mxu0 0.0
        %1491 = vmatprep.subr.mxu0 0.0
        %1492 = vmatpush1.msra.mxu0 0.0
        %1493 = vmatprep.subr.mxu0 0.0
        %1494 = vmatpush1.msra.mxu0 0.0
        %1495 = vmatprep.subr.mxu0 0.0
        %1496 = vmatpush1.msra.mxu0 0.0
        %1497 = vmatprep.subr.mxu0 0.0
        %1498 = vmatpush1.msra.mxu0 0.0
        %1499 = vmatprep.subr.mxu0 0.0
        %1500 = vmatpush1.msra.mxu0 0.0
        %1501 = vmatprep.subr.mxu0 0.0
        %1502 = vmatpush1.msra.mxu0 0.0
        %1503 = vmatprep.subr.mxu0 0.0
        %1504 = vmatpush1.msra.mxu0 0.0
        %1505 = vmatprep.subr.mxu0 0.0
        %1506 = vmatpush1.msra.mxu0 0.0
        %1507 = vmatprep.subr.mxu0 0.0
        %1508 = vmatpush1.msra.mxu0 0.0
        %1509 = vmatprep.subr.mxu0 0.0
        %1510 = vmatpush1.msra.mxu0 0.0
        %1511 = vmatprep.subr.mxu0 0.0
        %1512 = vmatpush1.msra.mxu0 0.0
        %1513 = vmatprep.subr.mxu0 0.0
        %1514 = vmatpush1.msra.mxu0 0.0
        %1515 = vmatprep.mubr.f32.mxu0 0.0
        %1516 = vmatmul.mubr.f32.gmra.mrb[0].mxu0 %v1449
        %v1517 = vpop.f32.mrb[0].mxu0
        %v1518 = vadd.f32 0.0, %v1517
        %v1519 = vpop.f32.mrb[0].mxu0
        %1520 = vdwg.mxu0
        %v1521 = vadd.f32 %v1289, %v1518
        %v1522 = vmul.f32 %v1521, %v1521
        %v1523 = vsel %vm391, %v1522, 0.0
        %1524 = vadd.xlane.f32.xlu0 %v1523
        %v1525 = vpop.xlane.xlu0 %1524
        %v1526 = vmul.f32 %v1525, %v395
        %v1527 = vadd.f32 %v1526, 1e-06
        %v1528 = vrsqrt.pop %v1527
        %v1529 = vmul.f32 %v1521, %v1528
        %v1530 = vld [vmem:[%s7] sm:$0x1]
        %v1532 = vlaneseq
        %v1533 = vshrl.u32 %v1532, 7
        %v1534 = vsub.s32 0, %v1533
        %v1535 = vrot.slane %v1530, %v1534
        %v1537 = vmul.f32 %v1529, %v1535
        %v1538 = vld [vmem:[%s8] sm:$0xff]
        %v1539 = vld [vmem:[%s8 + $0x8] sm:$0xff]
        %v1540 = vld [vmem:[%s8 + $0x10] sm:$0xff]
        %v1541 = vld [vmem:[%s8 + $0x18] sm:$0xff]
        %v1543 = vsel %vm391, %v1537, 0
        %1545 = vmatprep.subr.mxu0 0.0
        %1546 = vmatpush1.msra.mxu0 %v1538
        %1547 = vmatprep.subr.mxu0 0.0
        %1548 = vmatpush1.msra.mxu0 %v1539
        %1549 = vmatprep.subr.mxu0 0.0
        %1550 = vmatpush1.msra.mxu0 %v1540
        %1551 = vmatprep.subr.mxu0 0.0
        %1552 = vmatpush1.msra.mxu0 %v1541
        %1553 = vmatprep.subr.mxu0 0.0
        %1554 = vmatpush1.msra.mxu0 0.0
        %1555 = vmatprep.subr.mxu0 0.0
        %1556 = vmatpush1.msra.mxu0 0.0
        %1557 = vmatprep.subr.mxu0 0.0
        %1558 = vmatpush1.msra.mxu0 0.0
        %1559 = vmatprep.subr.mxu0 0.0
        %1560 = vmatpush1.msra.mxu0 0.0
        %1561 = vmatprep.subr.mxu0 0.0
        %1562 = vmatpush1.msra.mxu0 0.0
        %1563 = vmatprep.subr.mxu0 0.0
        %1564 = vmatpush1.msra.mxu0 0.0
        %1565 = vmatprep.subr.mxu0 0.0
        %1566 = vmatpush1.msra.mxu0 0.0
        %1567 = vmatprep.subr.mxu0 0.0
        %1568 = vmatpush1.msra.mxu0 0.0
        %1569 = vmatprep.subr.mxu0 0.0
        %1570 = vmatpush1.msra.mxu0 0.0
        %1571 = vmatprep.subr.mxu0 0.0
        %1572 = vmatpush1.msra.mxu0 0.0
        %1573 = vmatprep.subr.mxu0 0.0
        %1574 = vmatpush1.msra.mxu0 0.0
        %1575 = vmatprep.subr.mxu0 0.0
        %1576 = vmatpush1.msra.mxu0 0.0
        %1577 = vmatprep.subr.mxu0 0.0
        %1578 = vmatpush1.msra.mxu0 0.0
        %1579 = vmatprep.subr.mxu0 0.0
        %1580 = vmatpush1.msra.mxu0 0.0
        %1581 = vmatprep.subr.mxu0 0.0
        %1582 = vmatpush1.msra.mxu0 0.0
        %1583 = vmatprep.subr.mxu0 0.0
        %1584 = vmatpush1.msra.mxu0 0.0
        %1585 = vmatprep.subr.mxu0 0.0
        %1586 = vmatpush1.msra.mxu0 0.0
        %1587 = vmatprep.subr.mxu0 0.0
        %1588 = vmatpush1.msra.mxu0 0.0
        %1589 = vmatprep.subr.mxu0 0.0
        %1590 = vmatpush1.msra.mxu0 0.0
        %1591 = vmatprep.subr.mxu0 0.0
        %1592 = vmatpush1.msra.mxu0 0.0
        %1593 = vmatprep.subr.mxu0 0.0
        %1594 = vmatpush1.msra.mxu0 0.0
        %1595 = vmatprep.subr.mxu0 0.0
        %1596 = vmatpush1.msra.mxu0 0.0
        %1597 = vmatprep.subr.mxu0 0.0
        %1598 = vmatpush1.msra.mxu0 0.0
        %1599 = vmatprep.subr.mxu0 0.0
        %1600 = vmatpush1.msra.mxu0 0.0
        %1601 = vmatprep.subr.mxu0 0.0
        %1602 = vmatpush1.msra.mxu0 0.0
        %1603 = vmatprep.subr.mxu0 0.0
        %1604 = vmatpush1.msra.mxu0 0.0
        %1605 = vmatprep.subr.mxu0 0.0
        %1606 = vmatpush1.msra.mxu0 0.0
        %1607 = vmatprep.subr.mxu0 0.0
        %1608 = vmatpush1.msra.mxu0 0.0
        %1609 = vmatprep.mubr.f32.mxu0 0.0
        %1610 = vmatmul.mubr.f32.gmra.mrb[0].mxu0 %v1543
        %v1611 = vpop.f32.mrb[0].mxu0
        %v1612 = vadd.f32 0.0, %v1611
        %v1613 = vpop.f32.mrb[0].mxu0
        %1614 = vdwg.mxu0
        %v1615 = vxor.u32 %v1612, 2147483648
        %v1616 = vmul.f32 %v1615, 1.442695
        %v1617 = vpow.pop %v1616
        %v1618 = vadd.f32 %v1617, 1.0
        %v1619 = vrcp.pop %v1618
        %v1620 = vmul.f32 1.0, %v1619
        %v1621 = vmul.f32 %v1612, %v1620
        %1623 = vrot.lane.b32.xlu0 %v1621, 64
        %v1624 = vpop.permute.xlu0 %1623
        %v1626 = vmul.f32 %v1612, %v1624
        %v1627 = vld [vmem:[%s9] sm:$0xff]
        %v1628 = vld [vmem:[%s9 + $0x8] sm:$0xff]
        %v1629 = vld [vmem:[%s9 + $0x10] sm:$0xff]
        %v1630 = vld [vmem:[%s9 + $0x18] sm:$0xff]
        %v1631 = vld [vmem:[%s9 + $0x20] sm:$0xff]
        %v1632 = vld [vmem:[%s9 + $0x28] sm:$0xff]
        %v1633 = vld [vmem:[%s9 + $0x30] sm:$0xff]
        %v1634 = vld [vmem:[%s9 + $0x38] sm:$0xff]
        %vm1635 = vcmask 523264
        %v1637 = vsel %vm1635, %v1626, 0
        %1639 = vmatprep.subr.mxu0 0.0
        %1640 = vmatpush1.msra.mxu0 %v1627
        %1641 = vmatprep.subr.mxu0 0.0
        %1642 = vmatpush1.msra.mxu0 %v1628
        %1643 = vmatprep.subr.mxu0 0.0
        %1644 = vmatpush1.msra.mxu0 %v1629
        %1645 = vmatprep.subr.mxu0 0.0
        %1646 = vmatpush1.msra.mxu0 %v1630
        %1647 = vmatprep.subr.mxu0 0.0
        %1648 = vmatpush1.msra.mxu0 %v1631
        %1649 = vmatprep.subr.mxu0 0.0
        %1650 = vmatpush1.msra.mxu0 %v1632
        %1651 = vmatprep.subr.mxu0 0.0
        %1652 = vmatpush1.msra.mxu0 %v1633
        %1653 = vmatprep.subr.mxu0 0.0
        %1654 = vmatpush1.msra.mxu0 %v1634
        %1655 = vmatprep.subr.mxu0 0.0
        %1656 = vmatpush1.msra.mxu0 0.0
        %1657 = vmatprep.subr.mxu0 0.0
        %1658 = vmatpush1.msra.mxu0 0.0
        %1659 = vmatprep.subr.mxu0 0.0
        %1660 = vmatpush1.msra.mxu0 0.0
        %1661 = vmatprep.subr.mxu0 0.0
        %1662 = vmatpush1.msra.mxu0 0.0
        %1663 = vmatprep.subr.mxu0 0.0
        %1664 = vmatpush1.msra.mxu0 0.0
        %1665 = vmatprep.subr.mxu0 0.0
        %1666 = vmatpush1.msra.mxu0 0.0
        %1667 = vmatprep.subr.mxu0 0.0
        %1668 = vmatpush1.msra.mxu0 0.0
        %1669 = vmatprep.subr.mxu0 0.0
        %1670 = vmatpush1.msra.mxu0 0.0
        %1671 = vmatprep.subr.mxu0 0.0
        %1672 = vmatpush1.msra.mxu0 0.0
        %1673 = vmatprep.subr.mxu0 0.0
        %1674 = vmatpush1.msra.mxu0 0.0
        %1675 = vmatprep.subr.mxu0 0.0
        %1676 = vmatpush1.msra.mxu0 0.0
        %1677 = vmatprep.subr.mxu0 0.0
        %1678 = vmatpush1.msra.mxu0 0.0
        %1679 = vmatprep.subr.mxu0 0.0
        %1680 = vmatpush1.msra.mxu0 0.0
        %1681 = vmatprep.subr.mxu0 0.0
        %1682 = vmatpush1.msra.mxu0 0.0
        %1683 = vmatprep.subr.mxu0 0.0
        %1684 = vmatpush1.msra.mxu0 0.0
        %1685 = vmatprep.subr.mxu0 0.0
        %1686 = vmatpush1.msra.mxu0 0.0
        %1687 = vmatprep.subr.mxu0 0.0
        %1688 = vmatpush1.msra.mxu0 0.0
        %1689 = vmatprep.subr.mxu0 0.0
        %1690 = vmatpush1.msra.mxu0 0.0
        %1691 = vmatprep.subr.mxu0 0.0
        %1692 = vmatpush1.msra.mxu0 0.0
        %1693 = vmatprep.subr.mxu0 0.0
        %1694 = vmatpush1.msra.mxu0 0.0
        %1695 = vmatprep.subr.mxu0 0.0
        %1696 = vmatpush1.msra.mxu0 0.0
        %1697 = vmatprep.subr.mxu0 0.0
        %1698 = vmatpush1.msra.mxu0 0.0
        %1699 = vmatprep.subr.mxu0 0.0
        %1700 = vmatpush1.msra.mxu0 0.0
        %1701 = vmatprep.subr.mxu0 0.0
        %1702 = vmatpush1.msra.mxu0 0.0
        %1703 = vmatprep.mubr.f32.mxu0 0.0
        %1704 = vmatmul.mubr.f32.gmra.mrb[0].mxu0 %v1637
        %v1705 = vpop.f32.mrb[0].mxu0
        %v1706 = vadd.f32 %v1521, %v1705
        %v1707 = vpop.f32.mrb[0].mxu0
        %1708 = vdwg.mxu0
        %1709 = vst.msk [vmem:[%s376] sm:$0xff] %vm391, %v1706
        %s1710 = sand.u32 %s257, 1
        %s1711 = scalar_lea.sflag [#allocation3], %s1710
        %s1712 = sand.u32 %s257, 1
        %s1713 = smul.addr %s1712, 8
        %s1714 = scalar_lea.vmem [#allocation2], %s1713
        // Predicated region
        $region61: #{pallas_decoder_layer.1} parent=59 // pred_check
          %p1715 = pneg %p267
        $region62: #{pallas_decoder_layer.1} parent=59 // pred_check_branch
          %1717 = sbr.rel (%p1715) target = $region64
        $region63: #{pallas_decoder_layer.1} parent=59 // pred_region
          %s1719 = ssub.s32 128, 128
          %1720 = vsyncadd %s1711, %s1719
          %s1721 = smul.addr %s24, 128
          %s1722 = scalar_lea.hbm %s10, %s1721
          %s1724 = sshll.u32 %s1714, 4
          %s1725 = int_to_ptr.vmem [resolvable:$true] %s1724
          %1727 = dma.vmem_to_hbm [thread:$0]  %s1725, 128, %s1722, %s1711
        $region64: #{pallas_decoder_layer.1} parent=59 // pred_fallthru
          _
      $region60: #{pallas_decoder_layer.1} parent=5 // pred_fallthru
        _
      %p1728 = scmp.le.s32.totalorder 2, %s19
      // Predicated region
      $region65: #{pallas_decoder_layer.1} parent=5 // pred_check
        %p1729 = pneg %p1728
      $region66: #{pallas_decoder_layer.1} parent=5 // pred_check_branch
        %1731 = sbr.rel (%p1729) target = $region68
      $region67: #{pallas_decoder_layer.1} parent=5 // pred_region
        %s1732 = ssub.s32 %s19, 2
        // Predicated region
        $region69: #{pallas_decoder_layer.1} parent=67 // pred_check
          %p1733 = pneg %p273
        $region70: #{pallas_decoder_layer.1} parent=67 // pred_check_branch
          %1735 = sbr.rel (%p1733) target = $region72
        $region71: #{pallas_decoder_layer.1} parent=67 // pred_region
          %s1736 = sand.u32 %s258, 1
          %s1737 = scalar_lea.sflag [#allocation3], %s1736
          %s1738 = sand.u32 %s258, 1
          %s1739 = smul.addr %s1738, 8
          %s1740 = scalar_lea.vmem [#allocation2], %s1739
          %1741 = dma.done %s1737, 128
        $region72: #{pallas_decoder_layer.1} parent=67 // pred_fallthru
          _
      $region68: #{pallas_decoder_layer.1} parent=5 // pred_fallthru
        _
    $region6: #{pallas_decoder_layer.1} parent=1 // loop_footer
      %s23 = sadd.s32 1, %s19
    $region7: #{pallas_decoder_layer.1} parent=1 // loop_footer_branch
      %18 = sbr.rel target = $region3
    $region8: #{pallas_decoder_layer.1} parent=1 // loop_exit
      _
    %1742 = vsyncpa [#allocation3], 1
    %s1743 = scalar_lea.sflag [#allocation3], 1
    %1744 = vsyncpa %s1743, 1

</llo_original>
